<compile_context>
chip_gen: v6e
topology: v6e:2x2x1
jax: 0.10.0
libtpu: 0.0.40
codegen_flags: <defaults>
</compile_context>

<pallas_src>
import numpy as np
import jax
import jax.numpy as jnp
from jax.experimental import pallas as pl
from jax.experimental.pallas import tpu as pltpu

BN_EPS = 1e-5


def _aux_head_kernel(x_ref, wf_ref, b1_ref, w2_ref, b2_ref, wl_ref, bl_ref,
                     out_ref):
    # ReLU on the raw (bf16) input tile: (TN, C*49)
    x = jnp.maximum(x_ref[...], 0).astype(jnp.bfloat16)

    # [pool + conv1x1 + BN1-scale] fused: (TN, C*49) @ (C*49, 512) -> (TN, 512)
    # column index = window*128 + out_channel (window = kh*2 + kw)
    h = jnp.dot(x, wf_ref[...], preferred_element_type=jnp.float32)
    h = jnp.maximum(h + b1_ref[...], 0.0)                 # BN1 shift + ReLU

    # conv2x2 (+ BN2-scale folded): one K=512 matmul -> (TN, 768)
    g = jnp.dot(h.astype(jnp.bfloat16), w2_ref[...],
                preferred_element_type=jnp.float32)
    g = jnp.maximum(g + b2_ref[...], 0.0)                 # BN2 shift + ReLU

    # classifier: (TN, 768) @ (768, 128-padded) + bias, lane-dense store
    out = jnp.dot(g.astype(jnp.bfloat16), wl_ref[...],
                  preferred_element_type=jnp.float32) + bl_ref[...]
    out_ref[...] = out.astype(out_ref.dtype)


def _make_pool_matrix(H, W, k, stride):
    """(H*W, n_windows) matrix whose columns average one k x k window."""
    oh = (H - k) // stride + 1
    ow = (W - k) // stride + 1
    P = np.zeros((H * W, oh * ow), dtype=np.float32)
    for wr in range(oh):
        for wc in range(ow):
            win = wr * ow + wc
            for r in range(wr * stride, wr * stride + k):
                for c in range(wc * stride, wc * stride + k):
                    P[r * W + c, win] = 1.0 / (k * k)
    return jnp.asarray(P)


def init_params(key, C, num_classes):
    ks = jax.random.split(key, 12)
    p = {}
    # Conv2d(C, 128, 1, bias=False)
    p['w1'] = jax.random.normal(ks[0], (128, C, 1, 1), jnp.float32) * 0.1
    # BatchNorm2d(128)  (eval-mode folded scale/shift)
    g1 = 1.0 + 0.1 * jax.random.normal(ks[1], (128,), jnp.float32)
    be1 = 0.1 * jax.random.normal(ks[2], (128,), jnp.float32)
    rm1 = 0.1 * jax.random.normal(ks[3], (128,), jnp.float32)
    rv1 = jax.random.uniform(ks[4], (128,), jnp.float32, 0.5, 1.5)
    p['s1'] = g1 / jnp.sqrt(rv1 + BN_EPS)
    p['b1'] = be1 - rm1 * p['s1']
    # Conv2d(128, 768, 2, bias=False)
    p['w2'] = jax.random.normal(ks[5], (768, 128, 2, 2), jnp.float32) * 0.05
    # BatchNorm2d(768)
    g2 = 1.0 + 0.1 * jax.random.normal(ks[6], (768,), jnp.float32)
    be2 = 0.1 * jax.random.normal(ks[7], (768,), jnp.float32)
    rm2 = 0.1 * jax.random.normal(ks[8], (768,), jnp.float32)
    rv2 = jax.random.uniform(ks[9], (768,), jnp.float32, 0.5, 1.5)
    p['s2'] = g2 / jnp.sqrt(rv2 + BN_EPS)
    p['b2'] = be2 - rm2 * p['s2']
    # Linear(768, num_classes)
    p['wl'] = jax.random.normal(ks[10], (num_classes, 768), jnp.float32) * 0.05
    p['bl'] = 0.1 * jax.random.normal(ks[11], (num_classes,), jnp.float32)
    return p


def prepare_kernel_params(params, C, H, W, num_classes):
    """One-time host/XLA-side folding of pool, BN scales and class padding."""
    P = H * W
    pool_m = _make_pool_matrix(H, W, k=4, stride=3)          # (P, n_win)
    n_win = pool_m.shape[1]
    assert n_win == 4, "aux head assumes a 2x2 pooled map (7x7 input)"

    # Fold BN1 scale into conv1, then fold the pooling matrix into that weight:
    # Wf[(c*P + p), (w*128 + o)] = pool[p, w] * w1[o, c] * s1[o]
    w1s = params['w1'].reshape(128, C) * params['s1'][:, None]
    wf = jnp.einsum('pw,oc->cpwo', pool_m, w1s).reshape(C * P, 4 * 128)

    # Conv2x2 weight as (512, 768) with row index = (kh*2 + kw)*128 + m,
    # BN2 scale folded into output columns.
    w2t = jnp.transpose(params['w2'], (2, 3, 1, 0)).reshape(4 * 128, 768)
    w2s = w2t * params['s2'][None, :]

    # Classifier padded to a full lane width (unmasked stores).
    ncp = max(128, ((num_classes + 127) // 128) * 128)
    wl_pad = jnp.zeros((768, ncp), jnp.float32).at[:, :num_classes].set(
        params['wl'].T)
    bl_pad = jnp.zeros((1, ncp), jnp.float32).at[0, :num_classes].set(
        params['bl'])

    return {
        'wf': wf.astype(jnp.bfloat16),
        'b1': jnp.tile(params['b1'], 4).reshape(1, 512).astype(jnp.float32),
        'w2': w2s.astype(jnp.bfloat16),
        'b2': params['b2'].reshape(1, 768).astype(jnp.float32),
        'wl': wl_pad.astype(jnp.bfloat16),
        'bl': bl_pad,
        'num_classes': num_classes,
        'ncp': ncp,
    }


def aux_head_forward(x, kp):
    """x: (N, C, H, W) float32 (PyTorch NCHW)."""
    N, C, H, W = x.shape
    Kx = C * H * W
    ncp = kp['ncp']
    num_classes = kp['num_classes']

    # bf16 input (halves DMA bytes); ReLU happens inside the kernel and
    # commutes exactly with the cast.
    x_flat = x.reshape(N, Kx).astype(jnp.bfloat16)

    TN = N if N <= 256 else 256
    grid = (pl.cdiv(N, TN),)

    # VMEM budget: double-buffered x/out tiles + resident weights + headroom.
    w_bytes = 2 * ((kp['wf'].size + kp['w2'].size + kp['wl'].size) * 2
                   + (kp['b1'].size + kp['b2'].size + kp['bl'].size) * 4)
    tile_bytes = 2 * (TN * Kx * 2 + TN * ncp * 4)
    interm_bytes = TN * (512 + 768) * 4
    needed = w_bytes + tile_bytes + interm_bytes + (4 << 20)
    vmem_limit = int(min(max(needed, 32 << 20), 64 << 20))

    out = pl.pallas_call(
        _aux_head_kernel,
        out_shape=jax.ShapeDtypeStruct((N, ncp), jnp.float32),
        grid_spec=pltpu.PrefetchScalarGridSpec(
            num_scalar_prefetch=0,
            grid=grid,
            in_specs=[
                pl.BlockSpec((TN, Kx), lambda i: (i, 0)),        # x tile
                pl.BlockSpec((Kx, 512), lambda i: (0, 0)),       # fused pool+conv1
                pl.BlockSpec((1, 512), lambda i: (0, 0)),        # BN1 shift
                pl.BlockSpec((512, 768), lambda i: (0, 0)),      # conv2x2
                pl.BlockSpec((1, 768), lambda i: (0, 0)),        # BN2 shift
                pl.BlockSpec((768, ncp), lambda i: (0, 0)),      # classifier W
                pl.BlockSpec((1, ncp), lambda i: (0, 0)),        # classifier b
            ],
            out_specs=pl.BlockSpec((TN, ncp), lambda i: (i, 0)),
        ),
        compiler_params=pltpu.CompilerParams(
            dimension_semantics=("parallel",),
            vmem_limit_bytes=vmem_limit,
        ),
    )(x_flat, kp['wf'], kp['b1'], kp['w2'], kp['b2'], kp['wl'], kp['bl'])

    return out[:, :num_classes]


def reference_forward(x, p):
    """Plain-JAX f32 reference of the PyTorch forward (BN in eval mode)."""
    N, C, H, W = x.shape
    xr = jnp.maximum(x, 0.0)
    rows = []
    for wr in range(2):
        cols = []
        for wc in range(2):
            win = xr[:, :, wr * 3:wr * 3 + 4, wc * 3:wc * 3 + 4]
            cols.append(jnp.mean(win, axis=(2, 3)))
        rows.append(jnp.stack(cols, axis=-1))
    pooled = jnp.stack(rows, axis=-2)                               # (N, C, 2, 2)
    h = jnp.einsum('nchw,oc->nohw', pooled, p['w1'].reshape(128, C))
    h = h * p['s1'][None, :, None, None] + p['b1'][None, :, None, None]
    h = jnp.maximum(h, 0.0)
    g = jnp.einsum('nchw,ochw->no', h, p['w2'])
    g = g * p['s2'][None, :] + p['b2'][None, :]
    g = jnp.maximum(g, 0.0)
    return g @ p['wl'].T + p['bl'][None, :]


if __name__ == "__main__":
    key = jax.random.PRNGKey(0)
    kx, kp_key = jax.random.split(key)

    N, C, H, W, num_classes = 2, 4, 7, 7, 10   # "assuming input size 7x7"
    x = jax.random.normal(kx, (N, C, H, W), jnp.float32)
    params = init_params(kp_key, C, num_classes)

    kparams = prepare_kernel_params(params, C, H, W, num_classes)
    out = aux_head_forward(x, kparams)
    out = jax.block_until_ready(out)

    ref = jax.block_until_ready(reference_forward(x, params))
    np.testing.assert_allclose(np.asarray(out), np.asarray(ref),
                               rtol=2e-2, atol=2e-2)
    assert out.shape == (N, num_classes)
    print("KERNEL_OK")
</pallas_src>

<mosaic_0001>
module attributes {stable_mosaic.version = 11 : i64} {
  func.func @_aux_head_kernel(%arg0: i32, %arg1: memref<2x196xbf16, #tpu.memory_space<vmem>>, %arg2: memref<196x512xbf16, #tpu.memory_space<vmem>>, %arg3: memref<1x512xf32, #tpu.memory_space<vmem>>, %arg4: memref<512x768xbf16, #tpu.memory_space<vmem>>, %arg5: memref<1x768xf32, #tpu.memory_space<vmem>>, %arg6: memref<768x128xbf16, #tpu.memory_space<vmem>>, %arg7: memref<1x128xf32, #tpu.memory_space<vmem>>, %arg8: memref<2x128xf32, #tpu.memory_space<vmem>>) attributes {dimension_semantics = [#tpu.dimension_semantics<parallel>], iteration_bounds = array<i64: 1>, scalar_prefetch = 0 : i64, scratch_operands = 0 : i64, tpu.core_type = #tpu.core_type<tc>, window_params = [{transform_indices = @transform_0, window_bounds = array<i64: 2, 196>}, {pipeline_mode = #tpu.pipeline_mode<synchronous>, transform_indices = @transform_1, window_bounds = array<i64: 196, 512>}, {pipeline_mode = #tpu.pipeline_mode<synchronous>, transform_indices = @transform_2, window_bounds = array<i64: 1, 512>}, {pipeline_mode = #tpu.pipeline_mode<synchronous>, transform_indices = @transform_3, window_bounds = array<i64: 512, 768>}, {pipeline_mode = #tpu.pipeline_mode<synchronous>, transform_indices = @transform_4, window_bounds = array<i64: 1, 768>}, {pipeline_mode = #tpu.pipeline_mode<synchronous>, transform_indices = @transform_5, window_bounds = array<i64: 768, 128>}, {pipeline_mode = #tpu.pipeline_mode<synchronous>, transform_indices = @transform_6, window_bounds = array<i64: 1, 128>}, {transform_indices = @transform_7, window_bounds = array<i64: 2, 128>}]} {
    %c0 = arith.constant 0 : index
    %c0_0 = arith.constant 0 : index
    %0 = vector.load %arg1[%c0, %c0_0] : memref<2x196xbf16, #tpu.memory_space<vmem>>, vector<2x196xbf16>
    %cst = arith.constant 0.000000e+00 : bf16
    %1 = vector.broadcast %cst : bf16 to vector<2x196xbf16>
    %2 = arith.maximumf %0, %1 : vector<2x196xbf16>
    %c0_1 = arith.constant 0 : index
    %c0_2 = arith.constant 0 : index
    %3 = vector.load %arg2[%c0_1, %c0_2] : memref<196x512xbf16, #tpu.memory_space<vmem>>, vector<196x512xbf16>
    %cst_3 = arith.constant dense<0.000000e+00> : vector<2x512xf32>
    %4 = tpu.matmul %2, %3, %cst_3 {dimension_numbers = #tpu.dot_dimension_numbers<[1], [0], [0], [1], [0, 0, 1, 1], [], []>} : vector<2x196xbf16>, vector<196x512xbf16>, vector<2x512xf32> -> vector<2x512xf32>
    %c0_4 = arith.constant 0 : index
    %c0_5 = arith.constant 0 : index
    %5 = vector.load %arg3[%c0_4, %c0_5] : memref<1x512xf32, #tpu.memory_space<vmem>>, vector<1x512xf32>
    %6 = vector.broadcast %5 : vector<1x512xf32> to vector<2x512xf32>
    %7 = arith.addf %4, %6 : vector<2x512xf32>
    %cst_6 = arith.constant 0.000000e+00 : f32
    %8 = vector.broadcast %cst_6 : f32 to vector<2x512xf32>
    %9 = arith.maximumf %7, %8 : vector<2x512xf32>
    %10 = arith.truncf %9 : vector<2x512xf32> to vector<2x512xbf16>
    %c0_7 = arith.constant 0 : index
    %c0_8 = arith.constant 0 : index
    %11 = vector.load %arg4[%c0_7, %c0_8] : memref<512x768xbf16, #tpu.memory_space<vmem>>, vector<512x768xbf16>
    %cst_9 = arith.constant dense<0.000000e+00> : vector<2x768xf32>
    %12 = tpu.matmul %10, %11, %cst_9 {dimension_numbers = #tpu.dot_dimension_numbers<[1], [0], [0], [1], [0, 0, 1, 1], [], []>} : vector<2x512xbf16>, vector<512x768xbf16>, vector<2x768xf32> -> vector<2x768xf32>
    %c0_10 = arith.constant 0 : index
    %c0_11 = arith.constant 0 : index
    %13 = vector.load %arg5[%c0_10, %c0_11] : memref<1x768xf32, #tpu.memory_space<vmem>>, vector<1x768xf32>
    %14 = vector.broadcast %13 : vector<1x768xf32> to vector<2x768xf32>
    %15 = arith.addf %12, %14 : vector<2x768xf32>
    %cst_12 = arith.constant 0.000000e+00 : f32
    %16 = vector.broadcast %cst_12 : f32 to vector<2x768xf32>
    %17 = arith.maximumf %15, %16 : vector<2x768xf32>
    %18 = arith.truncf %17 : vector<2x768xf32> to vector<2x768xbf16>
    %c0_13 = arith.constant 0 : index
    %c0_14 = arith.constant 0 : index
    %19 = vector.load %arg6[%c0_13, %c0_14] : memref<768x128xbf16, #tpu.memory_space<vmem>>, vector<768x128xbf16>
    %cst_15 = arith.constant dense<0.000000e+00> : vector<2x128xf32>
    %20 = tpu.matmul %18, %19, %cst_15 {dimension_numbers = #tpu.dot_dimension_numbers<[1], [0], [0], [1], [0, 0, 1, 1], [], []>} : vector<2x768xbf16>, vector<768x128xbf16>, vector<2x128xf32> -> vector<2x128xf32>
    %c0_16 = arith.constant 0 : index
    %c0_17 = arith.constant 0 : index
    %21 = vector.load %arg7[%c0_16, %c0_17] : memref<1x128xf32, #tpu.memory_space<vmem>>, vector<1x128xf32>
    %22 = vector.broadcast %21 : vector<1x128xf32> to vector<2x128xf32>
    %23 = arith.addf %20, %22 : vector<2x128xf32>
    %c0_18 = arith.constant 0 : index
    %c0_19 = arith.constant 0 : index
    %24 = vector.load %arg8[%c0_18, %c0_19] : memref<2x128xf32, #tpu.memory_space<vmem>>, vector<2x128xf32>
    tpu.vector_store %arg8[%c0_18, %c0_19], %23 {strides = array<i32>} : memref<2x128xf32, #tpu.memory_space<vmem>>, vector<2x128xf32>,
    return
  }
  func.func @transform_0(%arg0: i32) -> (i32, i32) {
    %c0_i32 = arith.constant 0 : i32
    %c0_i32_0 = arith.constant 0 : i32
    return %arg0, %c0_i32 : i32, i32
  }
  func.func @transform_1(%arg0: i32) -> (i32, i32) {
    %c0_i32 = arith.constant 0 : i32
    %c0_i32_0 = arith.constant 0 : i32
    %c0_i32_1 = arith.constant 0 : i32
    return %c0_i32, %c0_i32_0 : i32, i32
  }
  func.func @transform_2(%arg0: i32) -> (i32, i32) {
    %c0_i32 = arith.constant 0 : i32
    %c0_i32_0 = arith.constant 0 : i32
    %c0_i32_1 = arith.constant 0 : i32
    return %c0_i32, %c0_i32_0 : i32, i32
  }
  func.func @transform_3(%arg0: i32) -> (i32, i32) {
    %c0_i32 = arith.constant 0 : i32
    %c0_i32_0 = arith.constant 0 : i32
    %c0_i32_1 = arith.constant 0 : i32
    return %c0_i32, %c0_i32_0 : i32, i32
  }
  func.func @transform_4(%arg0: i32) -> (i32, i32) {
    %c0_i32 = arith.constant 0 : i32
    %c0_i32_0 = arith.constant 0 : i32
    %c0_i32_1 = arith.constant 0 : i32
    return %c0_i32, %c0_i32_0 : i32, i32
  }
  func.func @transform_5(%arg0: i32) -> (i32, i32) {
    %c0_i32 = arith.constant 0 : i32
    %c0_i32_0 = arith.constant 0 : i32
    %c0_i32_1 = arith.constant 0 : i32
    return %c0_i32, %c0_i32_0 : i32, i32
  }
  func.func @transform_6(%arg0: i32) -> (i32, i32) {
    %c0_i32 = arith.constant 0 : i32
    %c0_i32_0 = arith.constant 0 : i32
    %c0_i32_1 = arith.constant 0 : i32
    return %c0_i32, %c0_i32_0 : i32, i32
  }
  func.func @transform_7(%arg0: i32) -> (i32, i32) {
    %c0_i32 = arith.constant 0 : i32
    %c0_i32_0 = arith.constant 0 : i32
    return %arg0, %c0_i32 : i32, i32
  }
}

</mosaic_0001>

<llo_original>
// kernel: tpu_custom_call.1
$region0: #{tpu_custom_call.1}
  #allocation0 [shape = 'u32[]', space=smem, size = 0x4, offset = 0x4, fixed_abs, tag = 'smem constant byte address 0x4 - core index']
  #allocation1 [shape = 'u32[144,128]{1,0:T(1,128)}', space=vmem, size = 0x12000, scoped, tag = 'internal scratch']
  %s0 = inlined_call_operand.hbm [shape: bf16[2,196], index: 0, kind: input, shape index: {}]
  %s1 = inlined_call_operand.hbm [shape: bf16[196,512], index: 1, kind: input, shape index: {}]
  %s2 = inlined_call_operand.hbm [shape: f32[1,512], index: 2, kind: input, shape index: {}]
  %s3 = inlined_call_operand.hbm [shape: bf16[512,768], index: 3, kind: input, shape index: {}]
  %s4 = inlined_call_operand.vmem [shape: f32[1,768], index: 4, kind: input, shape index: {}]
  %s5 = inlined_call_operand.hbm [shape: bf16[768,128], index: 5, kind: input, shape index: {}]
  %s6 = inlined_call_operand.vmem [shape: f32[1,128], index: 6, kind: input, shape index: {}]
  %s7 = inlined_call_operand.hbm [shape: f32[2,128], index: 7, kind: output, shape index: {}]
  %s8 = sld [smem:[#allocation0]]
  $region58: #{tpu_custom_call.1} parent=0
    _
  %s10 = ssub.s32 1, %s8
  %s11 = scalar_select 0, %s10, %s8
  $region1: #{tpu_custom_call.1} parent=0
    #allocation2 [shape = 'u8[1024]{0}', space=vmem, size = 0x400, scoped, tag = 'input window, operand 0, single buffered']
    #allocation3 [shape = 's32[1]{0}', space=sflag, size = 0x4, scoped, tag = 'scoped memory for tpu_custom_call.1']
    #allocation4 [shape = 's32[1]{0}', space=sflag, size = 0x4, scoped, tag = 'scoped memory for tpu_custom_call.1']
    #allocation5 [shape = 'u8[204800]{0}', space=vmem, size = 0x32000, scoped, tag = 'input window, operand 1, single buffered']
    #allocation6 [shape = 's32[1]{0}', space=sflag, size = 0x4, scoped, tag = 'scoped memory for tpu_custom_call.1']
    #allocation7 [shape = 'u8[2048]{0}', space=vmem, size = 0x800, scoped, tag = 'input window, operand 2, single buffered']
    #allocation8 [shape = 'u8[786432]{0}', space=vmem, size = 0xc0000, scoped, tag = 'input window, operand 3, single buffered']
    #allocation9 [shape = 's32[1]{0}', space=sflag, size = 0x4, scoped, tag = 'scoped memory for tpu_custom_call.1']
    #allocation10 [shape = 'u8[196608]{0}', space=vmem, size = 0x30000, scoped, tag = 'input window, operand 5, single buffered']
    #allocation11 [shape = 'u8[1024]{0}', space=vmem, size = 0x400, scoped, tag = 'output window, operand 0, single buffered']
    %12 = vsyncpa [#allocation3], 0
    %13 = vsyncpa [#allocation6], 0
    %14 = vsyncpa [#allocation9], 0
    %15 = vsyncpa [#allocation4], 0
    // Predicated region
    $region2: #{tpu_custom_call.1} parent=1 // pred_check
      _
    $region3: #{tpu_custom_call.1} parent=1 // pred_check_branch
      %17 = sbr.rel (0) target = $region5
    $region4: #{tpu_custom_call.1} parent=1 // pred_region
      %s19 = ssub.s32 32, 32
      %20 = vsyncadd [#allocation3], %s19
      %s22 = sshll.u32 [#allocation2], 4
      %s23 = int_to_ptr.vmem [resolvable:$true] %s22
      %25 = dma.hbm_to_vmem [thread:$0]  %s0, 32, %s23, [#allocation3]
    $region5: #{tpu_custom_call.1} parent=1 // pred_fallthru
      _
    // Predicated region
    $region6: #{tpu_custom_call.1} parent=1 // pred_check
      _
    $region7: #{tpu_custom_call.1} parent=1 // pred_check_branch
      %27 = sbr.rel (0) target = $region9
    $region8: #{tpu_custom_call.1} parent=1 // pred_region
      %s29 = ssub.s32 6400, 6400
      %30 = vsyncadd [#allocation6], %s29
      %s31 = sshll.u32 [#allocation5], 4
      %s32 = int_to_ptr.vmem [resolvable:$true] %s31
      %37 = dma.hbm_to_vmem [thread:$0]  %s1, 6400, %s32, [#allocation6], 256, 256, 16
    $region9: #{tpu_custom_call.1} parent=1 // pred_fallthru
      _
    // Predicated region
    $region10: #{tpu_custom_call.1} parent=1 // pred_check
      _
    $region11: #{tpu_custom_call.1} parent=1 // pred_check_branch
      %39 = sbr.rel (0) target = $region13
    $region12: #{tpu_custom_call.1} parent=1 // pred_region
      %s41 = ssub.s32 64, 64
      %42 = vsyncadd [#allocation6], %s41
      %s44 = sshll.u32 [#allocation7], 4
      %s45 = int_to_ptr.vmem [resolvable:$true] %s44
      %47 = dma.hbm_to_vmem [thread:$0]  %s2, 64, %s45, [#allocation6]
    $region13: #{tpu_custom_call.1} parent=1 // pred_fallthru
      _
    // Predicated region
    $region14: #{tpu_custom_call.1} parent=1 // pred_check
      _
    $region15: #{tpu_custom_call.1} parent=1 // pred_check_branch
      %49 = sbr.rel (0) target = $region17
    $region16: #{tpu_custom_call.1} parent=1 // pred_region
      %s51 = ssub.s32 24576, 24576
      %52 = vsyncadd [#allocation9], %s51
      %s53 = sshll.u32 [#allocation8], 4
      %s54 = int_to_ptr.vmem [resolvable:$true] %s53
      %59 = dma.hbm_to_vmem [thread:$0]  %s3, 24576, %s54, [#allocation9], 384, 384, 24
    $region17: #{tpu_custom_call.1} parent=1 // pred_fallthru
      _
    // Predicated region
    $region18: #{tpu_custom_call.1} parent=1 // pred_check
      _
    $region19: #{tpu_custom_call.1} parent=1 // pred_check_branch
      %61 = sbr.rel (0) target = $region21
    $region20: #{tpu_custom_call.1} parent=1 // pred_region
      _
    $region21: #{tpu_custom_call.1} parent=1 // pred_fallthru
      _
    // Predicated region
    $region22: #{tpu_custom_call.1} parent=1 // pred_check
      _
    $region23: #{tpu_custom_call.1} parent=1 // pred_check_branch
      %63 = sbr.rel (0) target = $region25
    $region24: #{tpu_custom_call.1} parent=1 // pred_region
      %s65 = ssub.s32 6144, 6144
      %66 = vsyncadd [#allocation9], %s65
      %s67 = sshll.u32 [#allocation10], 4
      %s68 = int_to_ptr.vmem [resolvable:$true] %s67
      %73 = dma.hbm_to_vmem [thread:$0]  %s5, 6144, %s68, [#allocation9], 64, 64, 4
    $region25: #{tpu_custom_call.1} parent=1 // pred_fallthru
      _
    // Predicated region
    $region26: #{tpu_custom_call.1} parent=1 // pred_check
      _
    $region27: #{tpu_custom_call.1} parent=1 // pred_check_branch
      %75 = sbr.rel (0) target = $region29
    $region28: #{tpu_custom_call.1} parent=1 // pred_region
      _
    $region29: #{tpu_custom_call.1} parent=1 // pred_fallthru
      _
    // Predicated region
    $region30: #{tpu_custom_call.1} parent=1 // pred_check
      _
    $region31: #{tpu_custom_call.1} parent=1 // pred_check_branch
      %77 = sbr.rel (0) target = $region33
    $region32: #{tpu_custom_call.1} parent=1 // pred_region
      %78 = dma.done [#allocation3], 32
    $region33: #{tpu_custom_call.1} parent=1 // pred_fallthru
      _
    // Predicated region
    $region34: #{tpu_custom_call.1} parent=1 // pred_check
      _
    $region35: #{tpu_custom_call.1} parent=1 // pred_check_branch
      %80 = sbr.rel (0) target = $region37
    $region36: #{tpu_custom_call.1} parent=1 // pred_region
      %81 = dma.done [#allocation6], 6400
    $region37: #{tpu_custom_call.1} parent=1 // pred_fallthru
      _
    // Predicated region
    $region38: #{tpu_custom_call.1} parent=1 // pred_check
      _
    $region39: #{tpu_custom_call.1} parent=1 // pred_check_branch
      %83 = sbr.rel (0) target = $region41
    $region40: #{tpu_custom_call.1} parent=1 // pred_region
      %84 = dma.done [#allocation6], 64
    $region41: #{tpu_custom_call.1} parent=1 // pred_fallthru
      _
    // Predicated region
    $region42: #{tpu_custom_call.1} parent=1 // pred_check
      _
    $region43: #{tpu_custom_call.1} parent=1 // pred_check_branch
      %86 = sbr.rel (0) target = $region45
    $region44: #{tpu_custom_call.1} parent=1 // pred_region
      %87 = dma.done [#allocation9], 24576
    $region45: #{tpu_custom_call.1} parent=1 // pred_fallthru
      _
    // Predicated region
    $region46: #{tpu_custom_call.1} parent=1 // pred_check
      _
    $region47: #{tpu_custom_call.1} parent=1 // pred_check_branch
      %89 = sbr.rel (0) target = $region49
    $region48: #{tpu_custom_call.1} parent=1 // pred_region
      %90 = dma.done [#allocation9], 6144
    $region49: #{tpu_custom_call.1} parent=1 // pred_fallthru
      _
    %v92 = vld [vmem:[#allocation2] sm:$0x3]
    %v93 = vmax.bf16 %v92, 0
    %v94 = vld [vmem:[#allocation5] sm:$0xff]
    %v95 = vld [vmem:[#allocation5 + $0x8] sm:$0xff]
    %v96 = vld [vmem:[#allocation5 + $0x10] sm:$0xff]
    %v97 = vld [vmem:[#allocation5 + $0x18] sm:$0xff]
    %v98 = vld [vmem:[#allocation5 + $0x20] sm:$0xff]
    %v99 = vld [vmem:[#allocation5 + $0x28] sm:$0xff]
    %v100 = vld [vmem:[#allocation5 + $0x30] sm:$0xff]
    %v101 = vld [vmem:[#allocation5 + $0x38] sm:$0xff]
    %v102 = vld [vmem:[#allocation5 + $0x40] sm:$0xff]
    %v103 = vld [vmem:[#allocation5 + $0x48] sm:$0xff]
    %v104 = vld [vmem:[#allocation5 + $0x50] sm:$0xff]
    %v105 = vld [vmem:[#allocation5 + $0x58] sm:$0xff]
    %v106 = vld [vmem:[#allocation5 + $0x60] sm:$0xff]
    %v107 = vld [vmem:[#allocation5 + $0x68] sm:$0xff]
    %v108 = vld [vmem:[#allocation5 + $0x70] sm:$0xff]
    %v109 = vld [vmem:[#allocation5 + $0x78] sm:$0xff]
    %v110 = vld [vmem:[#allocation5 + $0x80] sm:$0xff]
    %v111 = vld [vmem:[#allocation5 + $0x88] sm:$0xff]
    %v112 = vld [vmem:[#allocation5 + $0x90] sm:$0xff]
    %v113 = vld [vmem:[#allocation5 + $0x98] sm:$0xff]
    %v114 = vld [vmem:[#allocation5 + $0xa0] sm:$0xff]
    %v115 = vld [vmem:[#allocation5 + $0xa8] sm:$0xff]
    %v116 = vld [vmem:[#allocation5 + $0xb0] sm:$0xff]
    %v117 = vld [vmem:[#allocation5 + $0xb8] sm:$0xff]
    %v118 = vld [vmem:[#allocation5 + $0xc0] sm:$0xff]
    %v119 = vld [vmem:[#allocation5 + $0xc8] sm:$0xff]
    %v120 = vld [vmem:[#allocation5 + $0xd0] sm:$0xff]
    %v121 = vld [vmem:[#allocation5 + $0xd8] sm:$0xff]
    %v122 = vld [vmem:[#allocation5 + $0xe0] sm:$0xff]
    %v123 = vld [vmem:[#allocation5 + $0xe8] sm:$0xff]
    %v124 = vld [vmem:[#allocation5 + $0xf0] sm:$0xff]
    %v125 = vld [vmem:[#allocation5 + $0xf8] sm:$0xff]
    %v126 = vld [vmem:[#allocation5 + $0x100] sm:$0xff]
    %v127 = vld [vmem:[#allocation5 + $0x108] sm:$0xff]
    %v128 = vld [vmem:[#allocation5 + $0x110] sm:$0xff]
    %v129 = vld [vmem:[#allocation5 + $0x118] sm:$0xff]
    %v130 = vld [vmem:[#allocation5 + $0x120] sm:$0xff]
    %v131 = vld [vmem:[#allocation5 + $0x128] sm:$0xff]
    %v132 = vld [vmem:[#allocation5 + $0x130] sm:$0xff]
    %v133 = vld [vmem:[#allocation5 + $0x138] sm:$0xff]
    %v134 = vld [vmem:[#allocation5 + $0x140] sm:$0xff]
    %v135 = vld [vmem:[#allocation5 + $0x148] sm:$0xff]
    %v136 = vld [vmem:[#allocation5 + $0x150] sm:$0xff]
    %v137 = vld [vmem:[#allocation5 + $0x158] sm:$0xff]
    %v138 = vld [vmem:[#allocation5 + $0x160] sm:$0xff]
    %v139 = vld [vmem:[#allocation5 + $0x168] sm:$0xff]
    %v140 = vld [vmem:[#allocation5 + $0x170] sm:$0xff]
    %v141 = vld [vmem:[#allocation5 + $0x178] sm:$0xff]
    %v142 = vld [vmem:[#allocation5 + $0x180] sm:$0x33]
    %v143 = vld [vmem:[#allocation5 + $0x188] sm:$0x33]
    %v144 = vld [vmem:[#allocation7] sm:$0xf]
    %v146 = vlaneseq
    %v147 = vshrl.u32 %v146, 7
    %v148 = vsub.s32 0, %v147
    %v149 = vrot.slane %v144, %v148
    %v150 = vlaneseq
    %v151 = vshrl.u32 %v150, 7
    %v152 = vsub.s32 1, %v151
    %v153 = vrot.slane %v144, %v152
    %v154 = vlaneseq
    %v155 = vshrl.u32 %v154, 7
    %v156 = vsub.s32 2, %v155
    %v157 = vrot.slane %v144, %v156
    %v158 = vlaneseq
    %v159 = vshrl.u32 %v158, 7
    %v160 = vsub.s32 3, %v159
    %v161 = vrot.slane %v144, %v160
    %v168 = vunpack.c.l.s4 1966171168
    %v169 = vunpack.c.0.s8 %v168
    %v170 = vlaneseq
    %v171 = vshrl.u32 %v170, 7
    %v172 = vsub.s32 %v169, %v171
    %v173 = vrot.slane %v93, %v172
    %v174 = vcombine.high %v173, %v173
    %v176 = vunpack.c.l.s4 1966171168
    %v177 = vunpack.c.0.s8 %v176
    %v178 = vlaneseq
    %v179 = vshrl.u32 %v178, 7
    %v180 = vsub.s32 %v177, %v179
    %v181 = vrot.slane %v173, %v180
    %v183 = vunpack.c.l.s4 1966171168
    %v184 = vunpack.c.0.s8 %v183
    %v185 = vlaneseq
    %v186 = vshrl.u32 %v185, 7
    %v187 = vsub.s32 %v184, %v186
    %v188 = vrot.slane %v174, %v187
    %v240 = vunpack.c.l.b16 %v94
    %v241 = vunpack.c.h.b16 %v94
    %v242 = vunpack.c.l.b16 %v95
    %v243 = vunpack.c.h.b16 %v95
    %v244 = vunpack.c.l.b16 %v96
    %v245 = vunpack.c.h.b16 %v96
    %v246 = vunpack.c.l.b16 %v97
    %v247 = vunpack.c.h.b16 %v97
    %v248 = vunpack.c.l.b16 %v98
    %v249 = vunpack.c.h.b16 %v98
    %v250 = vunpack.c.l.b16 %v99
    %v251 = vunpack.c.h.b16 %v99
    %v252 = vunpack.c.l.b16 %v100
    %v253 = vunpack.c.h.b16 %v100
    %v254 = vunpack.c.l.b16 %v101
    %v255 = vunpack.c.h.b16 %v101
    %v256 = vunpack.c.l.b16 %v102
    %v257 = vunpack.c.h.b16 %v102
    %v258 = vunpack.c.l.b16 %v103
    %v259 = vunpack.c.h.b16 %v103
    %v260 = vunpack.c.l.b16 %v104
    %v261 = vunpack.c.h.b16 %v104
    %v262 = vunpack.c.l.b16 %v105
    %v263 = vunpack.c.h.b16 %v105
    %v264 = vunpack.c.l.b16 %v106
    %v265 = vunpack.c.h.b16 %v106
    %v266 = vunpack.c.l.b16 %v107
    %v267 = vunpack.c.h.b16 %v107
    %v268 = vunpack.c.l.b16 %v108
    %v269 = vunpack.c.h.b16 %v108
    %v270 = vunpack.c.l.b16 %v109
    %v271 = vunpack.c.h.b16 %v109
    %v272 = vunpack.c.l.b16 %v110
    %v273 = vunpack.c.h.b16 %v110
    %v274 = vunpack.c.l.b16 %v111
    %v275 = vunpack.c.h.b16 %v111
    %v276 = vunpack.c.l.b16 %v112
    %v277 = vunpack.c.h.b16 %v112
    %v278 = vunpack.c.l.b16 %v113
    %v279 = vunpack.c.h.b16 %v113
    %v280 = vunpack.c.l.b16 %v114
    %v281 = vunpack.c.h.b16 %v114
    %v282 = vunpack.c.l.b16 %v115
    %v283 = vunpack.c.h.b16 %v115
    %v284 = vunpack.c.l.b16 %v116
    %v285 = vunpack.c.h.b16 %v116
    %v286 = vunpack.c.l.b16 %v117
    %v287 = vunpack.c.h.b16 %v117
    %v288 = vunpack.c.l.b16 %v118
    %v289 = vunpack.c.h.b16 %v118
    %v290 = vunpack.c.l.b16 %v119
    %v291 = vunpack.c.h.b16 %v119
    %v292 = vunpack.c.l.b16 %v120
    %v293 = vunpack.c.h.b16 %v120
    %v294 = vunpack.c.l.b16 %v121
    %v295 = vunpack.c.h.b16 %v121
    %v296 = vunpack.c.l.b16 %v122
    %v297 = vunpack.c.h.b16 %v122
    %v298 = vunpack.c.l.b16 %v123
    %v299 = vunpack.c.h.b16 %v123
    %v300 = vunpack.c.l.b16 %v124
    %v301 = vunpack.c.h.b16 %v124
    %v302 = vunpack.c.l.b16 %v125
    %v303 = vunpack.c.h.b16 %v125
    %v304 = vunpack.c.l.b16 %v126
    %v305 = vunpack.c.h.b16 %v126
    %v306 = vunpack.c.l.b16 %v127
    %v307 = vunpack.c.h.b16 %v127
    %v308 = vunpack.c.l.b16 %v128
    %v309 = vunpack.c.h.b16 %v128
    %v310 = vunpack.c.l.b16 %v129
    %v311 = vunpack.c.h.b16 %v129
    %v312 = vunpack.c.l.b16 %v130
    %v313 = vunpack.c.h.b16 %v130
    %v314 = vunpack.c.l.b16 %v131
    %v315 = vunpack.c.h.b16 %v131
    %v316 = vunpack.c.l.b16 %v132
    %v317 = vunpack.c.h.b16 %v132
    %v318 = vunpack.c.l.b16 %v133
    %v319 = vunpack.c.h.b16 %v133
    %v320 = vunpack.c.l.b16 %v134
    %v321 = vunpack.c.h.b16 %v134
    %v322 = vunpack.c.l.b16 %v135
    %v323 = vunpack.c.h.b16 %v135
    %v324 = vunpack.c.l.b16 %v136
    %v325 = vunpack.c.h.b16 %v136
    %v326 = vunpack.c.l.b16 %v137
    %v327 = vunpack.c.h.b16 %v137
    %v328 = vunpack.c.l.b16 %v138
    %v329 = vunpack.c.h.b16 %v138
    %v330 = vunpack.c.l.b16 %v139
    %v331 = vunpack.c.h.b16 %v139
    %v332 = vunpack.c.l.b16 %v140
    %v333 = vunpack.c.h.b16 %v140
    %v334 = vunpack.c.l.b16 %v141
    %v335 = vunpack.c.h.b16 %v141
    %v336 = vunpack.c.l.b16 %v142
    %v337 = vunpack.c.h.b16 %v142
    %v338 = vunpack.c.l.b16 %v143
    %v339 = vunpack.c.h.b16 %v143
    %v340 = vpack.c.b16 %v244, %v240
    %v341 = vpack.c.b16 %v245, %v241
    %v342 = vpack.c.b16 %v246, %v242
    %v343 = vpack.c.b16 %v247, %v243
    %v344 = vpack.c.b16 %v252, %v248
    %v345 = vpack.c.b16 %v253, %v249
    %v346 = vpack.c.b16 %v254, %v250
    %v347 = vpack.c.b16 %v255, %v251
    %v348 = vpack.c.b16 %v260, %v256
    %v349 = vpack.c.b16 %v261, %v257
    %v350 = vpack.c.b16 %v262, %v258
    %v351 = vpack.c.b16 %v263, %v259
    %v352 = vpack.c.b16 %v268, %v264
    %v353 = vpack.c.b16 %v269, %v265
    %v354 = vpack.c.b16 %v270, %v266
    %v355 = vpack.c.b16 %v271, %v267
    %v356 = vpack.c.b16 %v276, %v272
    %v357 = vpack.c.b16 %v277, %v273
    %v358 = vpack.c.b16 %v278, %v274
    %v359 = vpack.c.b16 %v279, %v275
    %v360 = vpack.c.b16 %v284, %v280
    %v361 = vpack.c.b16 %v285, %v281
    %v362 = vpack.c.b16 %v286, %v282
    %v363 = vpack.c.b16 %v287, %v283
    %v364 = vpack.c.b16 %v292, %v288
    %v365 = vpack.c.b16 %v293, %v289
    %v366 = vpack.c.b16 %v294, %v290
    %v367 = vpack.c.b16 %v295, %v291
    %v368 = vpack.c.b16 %v300, %v296
    %v369 = vpack.c.b16 %v301, %v297
    %v370 = vpack.c.b16 %v302, %v298
    %v371 = vpack.c.b16 %v303, %v299
    %v372 = vpack.c.b16 %v308, %v304
    %v373 = vpack.c.b16 %v309, %v305
    %v374 = vpack.c.b16 %v310, %v306
    %v375 = vpack.c.b16 %v311, %v307
    %v376 = vpack.c.b16 %v316, %v312
    %v377 = vpack.c.b16 %v317, %v313
    %v378 = vpack.c.b16 %v318, %v314
    %v379 = vpack.c.b16 %v319, %v315
    %v380 = vpack.c.b16 %v324, %v320
    %v381 = vpack.c.b16 %v325, %v321
    %v382 = vpack.c.b16 %v326, %v322
    %v383 = vpack.c.b16 %v327, %v323
    %v384 = vpack.c.b16 %v332, %v328
    %v385 = vpack.c.b16 %v333, %v329
    %v386 = vpack.c.b16 %v334, %v330
    %v387 = vpack.c.b16 %v335, %v331
    %v388 = vpack.c.b16 %v336, %v336
    %v389 = vpack.c.b16 %v337, %v337
    %v390 = vpack.c.b16 %v338, %v338
    %v391 = vpack.c.b16 %v339, %v339
    %vm440 = vcmask 556032
    %v442 = vsel %vm440, %v188, 0
    %vm444 = vcmask 1041408
    %v446 = vsel %vm444, %v388, 0
    %v449 = vsel %vm444, %v389, 0
    %v452 = vsel %vm444, %v390, 0
    %v455 = vsel %vm444, %v391, 0
    %457 = vmatprep.subr.bf16.mxu0 %v369
    %458 = vmatpush1.bf16.msra.mxu0 %v368
    %459 = vmatprep.subr.bf16.mxu0 %v365
    %460 = vmatpush1.bf16.msra.mxu0 %v364
    %461 = vmatprep.subr.bf16.mxu0 %v361
    %462 = vmatpush1.bf16.msra.mxu0 %v360
    %463 = vmatprep.subr.bf16.mxu0 %v357
    %464 = vmatpush1.bf16.msra.mxu0 %v356
    %465 = vmatprep.subr.bf16.mxu0 %v353
    %466 = vmatpush1.bf16.msra.mxu0 %v352
    %467 = vmatprep.subr.bf16.mxu0 %v349
    %468 = vmatpush1.bf16.msra.mxu0 %v348
    %469 = vmatprep.subr.bf16.mxu0 %v345
    %470 = vmatpush1.bf16.msra.mxu0 %v344
    %471 = vmatprep.subr.bf16.mxu0 %v341
    %472 = vmatpush1.bf16.msra.mxu0 %v340
    %473 = vmatprep.subr.bf16.mxu0 0
    %474 = vmatpush2.bf16.msra.mxu0 0
    %475 = vmatprep.subr.bf16.mxu0 0
    %476 = vmatpush2.bf16.msra.mxu0 0
    %477 = vmatprep.subr.bf16.mxu0 0
    %478 = vmatpush2.bf16.msra.mxu0 0
    %479 = vmatprep.subr.bf16.mxu0 %v449
    %480 = vmatpush2.bf16.msra.mxu0 %v446
    %481 = vmatprep.subr.bf16.mxu0 %v385
    %482 = vmatpush2.bf16.msra.mxu0 %v384
    %483 = vmatprep.subr.bf16.mxu0 %v381
    %484 = vmatpush2.bf16.msra.mxu0 %v380
    %485 = vmatprep.subr.bf16.mxu0 %v377
    %486 = vmatpush2.bf16.msra.mxu0 %v376
    %487 = vmatprep.subr.bf16.mxu0 %v373
    %488 = vmatpush2.bf16.msra.mxu0 %v372
    %489 = vmatprep.mubr.bf16.mxu0 %v442
    %490 = vmatmul.mubr.bf16.gmra.mxu0 %v181
    %v491 = vpop.f32.mrf.mxu0
    %v492 = vadd.f32 %v149, %v491
    %v493 = vpop.f32.mrf.mxu0
    %v494 = vadd.f32 %v153, %v493
    %v495 = vpop.f32.mrf.mxu0
    %v496 = vpop.f32.mrf.mxu0
    %497 = vdwg.mxu0
    %498 = vmatprep.subr.bf16.mxu0 %v371
    %499 = vmatpush1.bf16.msra.mxu0 %v370
    %500 = vmatprep.subr.bf16.mxu0 %v367
    %501 = vmatpush1.bf16.msra.mxu0 %v366
    %502 = vmatprep.subr.bf16.mxu0 %v363
    %503 = vmatpush1.bf16.msra.mxu0 %v362
    %504 = vmatprep.subr.bf16.mxu0 %v359
    %505 = vmatpush1.bf16.msra.mxu0 %v358
    %506 = vmatprep.subr.bf16.mxu0 %v355
    %507 = vmatpush1.bf16.msra.mxu0 %v354
    %508 = vmatprep.subr.bf16.mxu0 %v351
    %509 = vmatpush1.bf16.msra.mxu0 %v350
    %510 = vmatprep.subr.bf16.mxu0 %v347
    %511 = vmatpush1.bf16.msra.mxu0 %v346
    %512 = vmatprep.subr.bf16.mxu0 %v343
    %513 = vmatpush1.bf16.msra.mxu0 %v342
    %514 = vmatprep.subr.bf16.mxu0 0
    %515 = vmatpush2.bf16.msra.mxu0 0
    %516 = vmatprep.subr.bf16.mxu0 0
    %517 = vmatpush2.bf16.msra.mxu0 0
    %518 = vmatprep.subr.bf16.mxu0 0
    %519 = vmatpush2.bf16.msra.mxu0 0
    %520 = vmatprep.subr.bf16.mxu0 %v455
    %521 = vmatpush2.bf16.msra.mxu0 %v452
    %522 = vmatprep.subr.bf16.mxu0 %v387
    %523 = vmatpush2.bf16.msra.mxu0 %v386
    %524 = vmatprep.subr.bf16.mxu0 %v383
    %525 = vmatpush2.bf16.msra.mxu0 %v382
    %526 = vmatprep.subr.bf16.mxu0 %v379
    %527 = vmatpush2.bf16.msra.mxu0 %v378
    %528 = vmatprep.subr.bf16.mxu0 %v375
    %529 = vmatpush2.bf16.msra.mxu0 %v374
    %530 = vmatprep.mubr.bf16.mxu0 %v442
    %531 = vmatmul.mubr.bf16.gmra.mxu0 %v181
    %v532 = vpop.f32.mrf.mxu0
    %v533 = vadd.f32 %v157, %v532
    %v534 = vpop.f32.mrf.mxu0
    %v535 = vadd.f32 %v161, %v534
    %v536 = vpop.f32.mrf.mxu0
    %v537 = vpop.f32.mrf.mxu0
    %538 = vdwg.mxu0
    %v539 = vmax.f32 %v492, 0.0
    %v540 = vmax.f32 %v494, 0.0
    %v541 = vmax.f32 %v533, 0.0
    %v542 = vmax.f32 %v535, 0.0
    %v543 = vpack.c.bf16 %v539, %v539
    %v544 = vpack.c.bf16 %v540, %v540
    %v545 = vpack.c.bf16 %v541, %v541
    %v546 = vpack.c.bf16 %v542, %v542
    %v547 = vld [vmem:[#allocation8] sm:$0xff]
    %v548 = vld [vmem:[#allocation8 + $0x8] sm:$0xff]
    %v549 = vld [vmem:[#allocation8 + $0x10] sm:$0xff]
    %v550 = vld [vmem:[#allocation8 + $0x18] sm:$0xff]
    %v551 = vld [vmem:[#allocation8 + $0x20] sm:$0xff]
    %v552 = vld [vmem:[#allocation8 + $0x28] sm:$0xff]
    %v553 = vld [vmem:[#allocation8 + $0x30] sm:$0xff]
    %v554 = vld [vmem:[#allocation8 + $0x38] sm:$0xff]
    %v555 = vld [vmem:[#allocation8 + $0x40] sm:$0xff]
    %v556 = vld [vmem:[#allocation8 + $0x48] sm:$0xff]
    %v557 = vld [vmem:[#allocation8 + $0x50] sm:$0xff]
    %v558 = vld [vmem:[#allocation8 + $0x58] sm:$0xff]
    %v559 = vld [vmem:[#allocation8 + $0x60] sm:$0xff]
    %v560 = vld [vmem:[#allocation8 + $0x68] sm:$0xff]
    %v561 = vld [vmem:[#allocation8 + $0x70] sm:$0xff]
    %v562 = vld [vmem:[#allocation8 + $0x78] sm:$0xff]
    %v563 = vld [vmem:[#allocation8 + $0x80] sm:$0xff]
    %v564 = vld [vmem:[#allocation8 + $0x88] sm:$0xff]
    %v565 = vld [vmem:[#allocation8 + $0x90] sm:$0xff]
    %v566 = vld [vmem:[#allocation8 + $0x98] sm:$0xff]
    %v567 = vld [vmem:[#allocation8 + $0xa0] sm:$0xff]
    %v568 = vld [vmem:[#allocation8 + $0xa8] sm:$0xff]
    %v569 = vld [vmem:[#allocation8 + $0xb0] sm:$0xff]
    %v570 = vld [vmem:[#allocation8 + $0xb8] sm:$0xff]
    %v571 = vld [vmem:[#allocation8 + $0xc0] sm:$0xff]
    %v572 = vld [vmem:[#allocation8 + $0xc8] sm:$0xff]
    %v573 = vld [vmem:[#allocation8 + $0xd0] sm:$0xff]
    %v574 = vld [vmem:[#allocation8 + $0xd8] sm:$0xff]
    %v575 = vld [vmem:[#allocation8 + $0xe0] sm:$0xff]
    %v576 = vld [vmem:[#allocation8 + $0xe8] sm:$0xff]
    %v577 = vld [vmem:[#allocation8 + $0xf0] sm:$0xff]
    %v578 = vld [vmem:[#allocation8 + $0xf8] sm:$0xff]
    %v579 = vld [vmem:[#allocation8 + $0x100] sm:$0xff]
    %v580 = vld [vmem:[#allocation8 + $0x108] sm:$0xff]
    %v581 = vld [vmem:[#allocation8 + $0x110] sm:$0xff]
    %v582 = vld [vmem:[#allocation8 + $0x118] sm:$0xff]
    %v583 = vld [vmem:[#allocation8 + $0x120] sm:$0xff]
    %v584 = vld [vmem:[#allocation8 + $0x128] sm:$0xff]
    %v585 = vld [vmem:[#allocation8 + $0x130] sm:$0xff]
    %v586 = vld [vmem:[#allocation8 + $0x138] sm:$0xff]
    %v587 = vld [vmem:[#allocation8 + $0x140] sm:$0xff]
    %v588 = vld [vmem:[#allocation8 + $0x148] sm:$0xff]
    %v589 = vld [vmem:[#allocation8 + $0x150] sm:$0xff]
    %v590 = vld [vmem:[#allocation8 + $0x158] sm:$0xff]
    %v591 = vld [vmem:[#allocation8 + $0x160] sm:$0xff]
    %v592 = vld [vmem:[#allocation8 + $0x168] sm:$0xff]
    %v593 = vld [vmem:[#allocation8 + $0x170] sm:$0xff]
    %v594 = vld [vmem:[#allocation8 + $0x178] sm:$0xff]
    %v595 = vld [vmem:[#allocation8 + $0x180] sm:$0xff]
    %v596 = vld [vmem:[#allocation8 + $0x188] sm:$0xff]
    %v597 = vld [vmem:[#allocation8 + $0x190] sm:$0xff]
    %v598 = vld [vmem:[#allocation8 + $0x198] sm:$0xff]
    %v599 = vld [vmem:[#allocation8 + $0x1a0] sm:$0xff]
    %v600 = vld [vmem:[#allocation8 + $0x1a8] sm:$0xff]
    %v601 = vld [vmem:[#allocation8 + $0x1b0] sm:$0xff]
    %v602 = vld [vmem:[#allocation8 + $0x1b8] sm:$0xff]
    %v603 = vld [vmem:[#allocation8 + $0x1c0] sm:$0xff]
    %v604 = vld [vmem:[#allocation8 + $0x1c8] sm:$0xff]
    %v605 = vld [vmem:[#allocation8 + $0x1d0] sm:$0xff]
    %v606 = vld [vmem:[#allocation8 + $0x1d8] sm:$0xff]
    %v607 = vld [vmem:[#allocation8 + $0x1e0] sm:$0xff]
    %v608 = vld [vmem:[#allocation8 + $0x1e8] sm:$0xff]
    %v609 = vld [vmem:[#allocation8 + $0x1f0] sm:$0xff]
    %v610 = vld [vmem:[#allocation8 + $0x1f8] sm:$0xff]
    %v611 = vld [vmem:[#allocation8 + $0x200] sm:$0xff]
    %v612 = vld [vmem:[#allocation8 + $0x208] sm:$0xff]
    %v613 = vld [vmem:[#allocation8 + $0x210] sm:$0xff]
    %v614 = vld [vmem:[#allocation8 + $0x218] sm:$0xff]
    %v615 = vld [vmem:[#allocation8 + $0x220] sm:$0xff]
    %v616 = vld [vmem:[#allocation8 + $0x228] sm:$0xff]
    %v617 = vld [vmem:[#allocation8 + $0x230] sm:$0xff]
    %v618 = vld [vmem:[#allocation8 + $0x238] sm:$0xff]
    %v619 = vld [vmem:[#allocation8 + $0x240] sm:$0xff]
    %v620 = vld [vmem:[#allocation8 + $0x248] sm:$0xff]
    %v621 = vld [vmem:[#allocation8 + $0x250] sm:$0xff]
    %v622 = vld [vmem:[#allocation8 + $0x258] sm:$0xff]
    %v623 = vld [vmem:[#allocation8 + $0x260] sm:$0xff]
    %v624 = vld [vmem:[#allocation8 + $0x268] sm:$0xff]
    %v625 = vld [vmem:[#allocation8 + $0x270] sm:$0xff]
    %v626 = vld [vmem:[#allocation8 + $0x278] sm:$0xff]
    %v627 = vld [vmem:[#allocation8 + $0x280] sm:$0xff]
    %v628 = vld [vmem:[#allocation8 + $0x288] sm:$0xff]
    %v629 = vld [vmem:[#allocation8 + $0x290] sm:$0xff]
    %v630 = vld [vmem:[#allocation8 + $0x298] sm:$0xff]
    %v631 = vld [vmem:[#allocation8 + $0x2a0] sm:$0xff]
    %v632 = vld [vmem:[#allocation8 + $0x2a8] sm:$0xff]
    %v633 = vld [vmem:[#allocation8 + $0x2b0] sm:$0xff]
    %v634 = vld [vmem:[#allocation8 + $0x2b8] sm:$0xff]
    %v635 = vld [vmem:[#allocation8 + $0x2c0] sm:$0xff]
    %v636 = vld [vmem:[#allocation8 + $0x2c8] sm:$0xff]
    %v637 = vld [vmem:[#allocation8 + $0x2d0] sm:$0xff]
    %v638 = vld [vmem:[#allocation8 + $0x2d8] sm:$0xff]
    %v639 = vld [vmem:[#allocation8 + $0x2e0] sm:$0xff]
    %v640 = vld [vmem:[#allocation8 + $0x2e8] sm:$0xff]
    %v641 = vld [vmem:[#allocation8 + $0x2f0] sm:$0xff]
    %v642 = vld [vmem:[#allocation8 + $0x2f8] sm:$0xff]
    %v643 = vld [vmem:[#allocation8 + $0x300] sm:$0xff]
    %v644 = vld [vmem:[#allocation8 + $0x308] sm:$0xff]
    %v645 = vld [vmem:[#allocation8 + $0x310] sm:$0xff]
    %v646 = vld [vmem:[#allocation8 + $0x318] sm:$0xff]
    %v647 = vld [vmem:[#allocation8 + $0x320] sm:$0xff]
    %v648 = vld [vmem:[#allocation8 + $0x328] sm:$0xff]
    %v649 = vld [vmem:[#allocation8 + $0x330] sm:$0xff]
    %v650 = vld [vmem:[#allocation8 + $0x338] sm:$0xff]
    %v651 = vld [vmem:[#allocation8 + $0x340] sm:$0xff]
    %v652 = vld [vmem:[#allocation8 + $0x348] sm:$0xff]
    %v653 = vld [vmem:[#allocation8 + $0x350] sm:$0xff]
    %v654 = vld [vmem:[#allocation8 + $0x358] sm:$0xff]
    %v655 = vld [vmem:[#allocation8 + $0x360] sm:$0xff]
    %v656 = vld [vmem:[#allocation8 + $0x368] sm:$0xff]
    %v657 = vld [vmem:[#allocation8 + $0x370] sm:$0xff]
    %v658 = vld [vmem:[#allocation8 + $0x378] sm:$0xff]
    %v659 = vld [vmem:[#allocation8 + $0x380] sm:$0xff]
    %v660 = vld [vmem:[#allocation8 + $0x388] sm:$0xff]
    %v661 = vld [vmem:[#allocation8 + $0x390] sm:$0xff]
    %v662 = vld [vmem:[#allocation8 + $0x398] sm:$0xff]
    %v663 = vld [vmem:[#allocation8 + $0x3a0] sm:$0xff]
    %v664 = vld [vmem:[#allocation8 + $0x3a8] sm:$0xff]
    %v665 = vld [vmem:[#allocation8 + $0x3b0] sm:$0xff]
    %v666 = vld [vmem:[#allocation8 + $0x3b8] sm:$0xff]
    %v667 = vld [vmem:[#allocation8 + $0x3c0] sm:$0xff]
    %v668 = vld [vmem:[#allocation8 + $0x3c8] sm:$0xff]
    %v669 = vld [vmem:[#allocation8 + $0x3d0] sm:$0xff]
    %v670 = vld [vmem:[#allocation8 + $0x3d8] sm:$0xff]
    %v671 = vld [vmem:[#allocation8 + $0x3e0] sm:$0xff]
    %v672 = vld [vmem:[#allocation8 + $0x3e8] sm:$0xff]
    %v673 = vld [vmem:[#allocation8 + $0x3f0] sm:$0xff]
    %v674 = vld [vmem:[#allocation8 + $0x3f8] sm:$0xff]
    %v675 = vld [vmem:[#allocation8 + $0x400] sm:$0xff]
    %v676 = vld [vmem:[#allocation8 + $0x408] sm:$0xff]
    %v677 = vld [vmem:[#allocation8 + $0x410] sm:$0xff]
    %v678 = vld [vmem:[#allocation8 + $0x418] sm:$0xff]
    %v679 = vld [vmem:[#allocation8 + $0x420] sm:$0xff]
    %v680 = vld [vmem:[#allocation8 + $0x428] sm:$0xff]
    %v681 = vld [vmem:[#allocation8 + $0x430] sm:$0xff]
    %v682 = vld [vmem:[#allocation8 + $0x438] sm:$0xff]
    %v683 = vld [vmem:[#allocation8 + $0x440] sm:$0xff]
    %v684 = vld [vmem:[#allocation8 + $0x448] sm:$0xff]
    %v685 = vld [vmem:[#allocation8 + $0x450] sm:$0xff]
    %v686 = vld [vmem:[#allocation8 + $0x458] sm:$0xff]
    %v687 = vld [vmem:[#allocation8 + $0x460] sm:$0xff]
    %v688 = vld [vmem:[#allocation8 + $0x468] sm:$0xff]
    %v689 = vld [vmem:[#allocation8 + $0x470] sm:$0xff]
    %v690 = vld [vmem:[#allocation8 + $0x478] sm:$0xff]
    %v691 = vld [vmem:[#allocation8 + $0x480] sm:$0xff]
    %v692 = vld [vmem:[#allocation8 + $0x488] sm:$0xff]
    %v693 = vld [vmem:[#allocation8 + $0x490] sm:$0xff]
    %v694 = vld [vmem:[#allocation8 + $0x498] sm:$0xff]
    %v695 = vld [vmem:[#allocation8 + $0x4a0] sm:$0xff]
    %v696 = vld [vmem:[#allocation8 + $0x4a8] sm:$0xff]
    %v697 = vld [vmem:[#allocation8 + $0x4b0] sm:$0xff]
    %v698 = vld [vmem:[#allocation8 + $0x4b8] sm:$0xff]
    %v699 = vld [vmem:[#allocation8 + $0x4c0] sm:$0xff]
    %v700 = vld [vmem:[#allocation8 + $0x4c8] sm:$0xff]
    %v701 = vld [vmem:[#allocation8 + $0x4d0] sm:$0xff]
    %v702 = vld [vmem:[#allocation8 + $0x4d8] sm:$0xff]
    %v703 = vld [vmem:[#allocation8 + $0x4e0] sm:$0xff]
    %v704 = vld [vmem:[#allocation8 + $0x4e8] sm:$0xff]
    %v705 = vld [vmem:[#allocation8 + $0x4f0] sm:$0xff]
    %v706 = vld [vmem:[#allocation8 + $0x4f8] sm:$0xff]
    %v707 = vld [vmem:[#allocation8 + $0x500] sm:$0xff]
    %v708 = vld [vmem:[#allocation8 + $0x508] sm:$0xff]
    %v709 = vld [vmem:[#allocation8 + $0x510] sm:$0xff]
    %v710 = vld [vmem:[#allocation8 + $0x518] sm:$0xff]
    %v711 = vld [vmem:[#allocation8 + $0x520] sm:$0xff]
    %v712 = vld [vmem:[#allocation8 + $0x528] sm:$0xff]
    %v713 = vld [vmem:[#allocation8 + $0x530] sm:$0xff]
    %v714 = vld [vmem:[#allocation8 + $0x538] sm:$0xff]
    %v715 = vld [vmem:[#allocation8 + $0x540] sm:$0xff]
    %v716 = vld [vmem:[#allocation8 + $0x548] sm:$0xff]
    %v717 = vld [vmem:[#allocation8 + $0x550] sm:$0xff]
    %v718 = vld [vmem:[#allocation8 + $0x558] sm:$0xff]
    %v719 = vld [vmem:[#allocation8 + $0x560] sm:$0xff]
    %v720 = vld [vmem:[#allocation8 + $0x568] sm:$0xff]
    %v721 = vld [vmem:[#allocation8 + $0x570] sm:$0xff]
    %v722 = vld [vmem:[#allocation8 + $0x578] sm:$0xff]
    %v723 = vld [vmem:[#allocation8 + $0x580] sm:$0xff]
    %v724 = vld [vmem:[#allocation8 + $0x588] sm:$0xff]
    %v725 = vld [vmem:[#allocation8 + $0x590] sm:$0xff]
    %v726 = vld [vmem:[#allocation8 + $0x598] sm:$0xff]
    %v727 = vld [vmem:[#allocation8 + $0x5a0] sm:$0xff]
    %v728 = vld [vmem:[#allocation8 + $0x5a8] sm:$0xff]
    %v729 = vld [vmem:[#allocation8 + $0x5b0] sm:$0xff]
    %v730 = vld [vmem:[#allocation8 + $0x5b8] sm:$0xff]
    %v731 = vld [vmem:[#allocation8 + $0x5c0] sm:$0xff]
    %v732 = vld [vmem:[#allocation8 + $0x5c8] sm:$0xff]
    %v733 = vld [vmem:[#allocation8 + $0x5d0] sm:$0xff]
    %v734 = vld [vmem:[#allocation8 + $0x5d8] sm:$0xff]
    %v735 = vld [vmem:[#allocation8 + $0x5e0] sm:$0xff]
    %v736 = vld [vmem:[#allocation8 + $0x5e8] sm:$0xff]
    %v737 = vld [vmem:[#allocation8 + $0x5f0] sm:$0xff]
    %v738 = vld [vmem:[#allocation8 + $0x5f8] sm:$0xff]
    %v739 = vld [vmem:[%s4] sm:$0x3f]
    %v741 = vlaneseq
    %v742 = vshrl.u32 %v741, 7
    %v743 = vsub.s32 0, %v742
    %v744 = vrot.slane %v739, %v743
    %v745 = vlaneseq
    %v746 = vshrl.u32 %v745, 7
    %v747 = vsub.s32 1, %v746
    %v748 = vrot.slane %v739, %v747
    %v749 = vlaneseq
    %v750 = vshrl.u32 %v749, 7
    %v751 = vsub.s32 2, %v750
    %v752 = vrot.slane %v739, %v751
    %v753 = vlaneseq
    %v754 = vshrl.u32 %v753, 7
    %v755 = vsub.s32 3, %v754
    %v756 = vrot.slane %v739, %v755
    %v757 = vlaneseq
    %v758 = vshrl.u32 %v757, 7
    %v759 = vsub.s32 4, %v758
    %v760 = vrot.slane %v739, %v759
    %v761 = vlaneseq
    %v762 = vshrl.u32 %v761, 7
    %v763 = vsub.s32 5, %v762
    %v764 = vrot.slane %v739, %v763
    %v963 = vunpack.c.l.b16 %v547
    %v964 = vunpack.c.h.b16 %v547
    %v965 = vunpack.c.l.b16 %v548
    %v966 = vunpack.c.h.b16 %v548
    %v967 = vunpack.c.l.b16 %v549
    %v968 = vunpack.c.h.b16 %v549
    %v969 = vunpack.c.l.b16 %v550
    %v970 = vunpack.c.h.b16 %v550
    %v971 = vunpack.c.l.b16 %v551
    %v972 = vunpack.c.h.b16 %v551
    %v973 = vunpack.c.l.b16 %v552
    %v974 = vunpack.c.h.b16 %v552
    %v975 = vunpack.c.l.b16 %v553
    %v976 = vunpack.c.h.b16 %v553
    %v977 = vunpack.c.l.b16 %v554
    %v978 = vunpack.c.h.b16 %v554
    %v979 = vunpack.c.l.b16 %v555
    %v980 = vunpack.c.h.b16 %v555
    %v981 = vunpack.c.l.b16 %v556
    %v982 = vunpack.c.h.b16 %v556
    %v983 = vunpack.c.l.b16 %v557
    %v984 = vunpack.c.h.b16 %v557
    %v985 = vunpack.c.l.b16 %v558
    %v986 = vunpack.c.h.b16 %v558
    %v987 = vunpack.c.l.b16 %v559
    %v988 = vunpack.c.h.b16 %v559
    %v989 = vunpack.c.l.b16 %v560
    %v990 = vunpack.c.h.b16 %v560
    %v991 = vunpack.c.l.b16 %v561
    %v992 = vunpack.c.h.b16 %v561
    %v993 = vunpack.c.l.b16 %v562
    %v994 = vunpack.c.h.b16 %v562
    %v995 = vunpack.c.l.b16 %v563
    %v996 = vunpack.c.h.b16 %v563
    %v997 = vunpack.c.l.b16 %v564
    %v998 = vunpack.c.h.b16 %v564
    %v999 = vunpack.c.l.b16 %v565
    %v1000 = vunpack.c.h.b16 %v565
    %v1001 = vunpack.c.l.b16 %v566
    %v1002 = vunpack.c.h.b16 %v566
    %v1003 = vunpack.c.l.b16 %v567
    %v1004 = vunpack.c.h.b16 %v567
    %v1005 = vunpack.c.l.b16 %v568
    %v1006 = vunpack.c.h.b16 %v568
    %v1007 = vunpack.c.l.b16 %v569
    %v1008 = vunpack.c.h.b16 %v569
    %v1009 = vunpack.c.l.b16 %v570
    %v1010 = vunpack.c.h.b16 %v570
    %v1011 = vunpack.c.l.b16 %v571
    %v1012 = vunpack.c.h.b16 %v571
    %v1013 = vunpack.c.l.b16 %v572
    %v1014 = vunpack.c.h.b16 %v572
    %v1015 = vunpack.c.l.b16 %v573
    %v1016 = vunpack.c.h.b16 %v573
    %v1017 = vunpack.c.l.b16 %v574
    %v1018 = vunpack.c.h.b16 %v574
    %v1019 = vunpack.c.l.b16 %v575
    %v1020 = vunpack.c.h.b16 %v575
    %v1021 = vunpack.c.l.b16 %v576
    %v1022 = vunpack.c.h.b16 %v576
    %v1023 = vunpack.c.l.b16 %v577
    %v1024 = vunpack.c.h.b16 %v577
    %v1025 = vunpack.c.l.b16 %v578
    %v1026 = vunpack.c.h.b16 %v578
    %v1027 = vunpack.c.l.b16 %v579
    %v1028 = vunpack.c.h.b16 %v579
    %v1029 = vunpack.c.l.b16 %v580
    %v1030 = vunpack.c.h.b16 %v580
    %v1031 = vunpack.c.l.b16 %v581
    %v1032 = vunpack.c.h.b16 %v581
    %v1033 = vunpack.c.l.b16 %v582
    %v1034 = vunpack.c.h.b16 %v582
    %v1035 = vunpack.c.l.b16 %v583
    %v1036 = vunpack.c.h.b16 %v583
    %v1037 = vunpack.c.l.b16 %v584
    %v1038 = vunpack.c.h.b16 %v584
    %v1039 = vunpack.c.l.b16 %v585
    %v1040 = vunpack.c.h.b16 %v585
    %v1041 = vunpack.c.l.b16 %v586
    %v1042 = vunpack.c.h.b16 %v586
    %v1043 = vunpack.c.l.b16 %v587
    %v1044 = vunpack.c.h.b16 %v587
    %v1045 = vunpack.c.l.b16 %v588
    %v1046 = vunpack.c.h.b16 %v588
    %v1047 = vunpack.c.l.b16 %v589
    %v1048 = vunpack.c.h.b16 %v589
    %v1049 = vunpack.c.l.b16 %v590
    %v1050 = vunpack.c.h.b16 %v590
    %v1051 = vunpack.c.l.b16 %v591
    %v1052 = vunpack.c.h.b16 %v591
    %v1053 = vunpack.c.l.b16 %v592
    %v1054 = vunpack.c.h.b16 %v592
    %v1055 = vunpack.c.l.b16 %v593
    %v1056 = vunpack.c.h.b16 %v593
    %v1057 = vunpack.c.l.b16 %v594
    %v1058 = vunpack.c.h.b16 %v594
    %v1059 = vunpack.c.l.b16 %v595
    %v1060 = vunpack.c.h.b16 %v595
    %v1061 = vunpack.c.l.b16 %v596
    %v1062 = vunpack.c.h.b16 %v596
    %v1063 = vunpack.c.l.b16 %v597
    %v1064 = vunpack.c.h.b16 %v597
    %v1065 = vunpack.c.l.b16 %v598
    %v1066 = vunpack.c.h.b16 %v598
    %v1067 = vunpack.c.l.b16 %v599
    %v1068 = vunpack.c.h.b16 %v599
    %v1069 = vunpack.c.l.b16 %v600
    %v1070 = vunpack.c.h.b16 %v600
    %v1071 = vunpack.c.l.b16 %v601
    %v1072 = vunpack.c.h.b16 %v601
    %v1073 = vunpack.c.l.b16 %v602
    %v1074 = vunpack.c.h.b16 %v602
    %v1075 = vunpack.c.l.b16 %v603
    %v1076 = vunpack.c.h.b16 %v603
    %v1077 = vunpack.c.l.b16 %v604
    %v1078 = vunpack.c.h.b16 %v604
    %v1079 = vunpack.c.l.b16 %v605
    %v1080 = vunpack.c.h.b16 %v605
    %v1081 = vunpack.c.l.b16 %v606
    %v1082 = vunpack.c.h.b16 %v606
    %v1083 = vunpack.c.l.b16 %v607
    %v1084 = vunpack.c.h.b16 %v607
    %v1085 = vunpack.c.l.b16 %v608
    %v1086 = vunpack.c.h.b16 %v608
    %v1087 = vunpack.c.l.b16 %v609
    %v1088 = vunpack.c.h.b16 %v609
    %v1089 = vunpack.c.l.b16 %v610
    %v1090 = vunpack.c.h.b16 %v610
    %v1091 = vunpack.c.l.b16 %v611
    %v1092 = vunpack.c.h.b16 %v611
    %v1093 = vunpack.c.l.b16 %v612
    %v1094 = vunpack.c.h.b16 %v612
    %v1095 = vunpack.c.l.b16 %v613
    %v1096 = vunpack.c.h.b16 %v613
    %v1097 = vunpack.c.l.b16 %v614
    %v1098 = vunpack.c.h.b16 %v614
    %v1099 = vunpack.c.l.b16 %v615
    %v1100 = vunpack.c.h.b16 %v615
    %v1101 = vunpack.c.l.b16 %v616
    %v1102 = vunpack.c.h.b16 %v616
    %v1103 = vunpack.c.l.b16 %v617
    %v1104 = vunpack.c.h.b16 %v617
    %v1105 = vunpack.c.l.b16 %v618
    %v1106 = vunpack.c.h.b16 %v618
    %v1107 = vunpack.c.l.b16 %v619
    %v1108 = vunpack.c.h.b16 %v619
    %v1109 = vunpack.c.l.b16 %v620
    %v1110 = vunpack.c.h.b16 %v620
    %v1111 = vunpack.c.l.b16 %v621
    %v1112 = vunpack.c.h.b16 %v621
    %v1113 = vunpack.c.l.b16 %v622
    %v1114 = vunpack.c.h.b16 %v622
    %v1115 = vunpack.c.l.b16 %v623
    %v1116 = vunpack.c.h.b16 %v623
    %v1117 = vunpack.c.l.b16 %v624
    %v1118 = vunpack.c.h.b16 %v624
    %v1119 = vunpack.c.l.b16 %v625
    %v1120 = vunpack.c.h.b16 %v625
    %v1121 = vunpack.c.l.b16 %v626
    %v1122 = vunpack.c.h.b16 %v626
    %v1123 = vunpack.c.l.b16 %v627
    %v1124 = vunpack.c.h.b16 %v627
    %v1125 = vunpack.c.l.b16 %v628
    %v1126 = vunpack.c.h.b16 %v628
    %v1127 = vunpack.c.l.b16 %v629
    %v1128 = vunpack.c.h.b16 %v629
    %v1129 = vunpack.c.l.b16 %v630
    %v1130 = vunpack.c.h.b16 %v630
    %v1131 = vunpack.c.l.b16 %v631
    %v1132 = vunpack.c.h.b16 %v631
    %v1133 = vunpack.c.l.b16 %v632
    %v1134 = vunpack.c.h.b16 %v632
    %v1135 = vunpack.c.l.b16 %v633
    %v1136 = vunpack.c.h.b16 %v633
    %v1137 = vunpack.c.l.b16 %v634
    %v1138 = vunpack.c.h.b16 %v634
    %v1139 = vunpack.c.l.b16 %v635
    %v1140 = vunpack.c.h.b16 %v635
    %v1141 = vunpack.c.l.b16 %v636
    %v1142 = vunpack.c.h.b16 %v636
    %v1143 = vunpack.c.l.b16 %v637
    %v1144 = vunpack.c.h.b16 %v637
    %v1145 = vunpack.c.l.b16 %v638
    %v1146 = vunpack.c.h.b16 %v638
    %v1147 = vunpack.c.l.b16 %v639
    %v1148 = vunpack.c.h.b16 %v639
    %v1149 = vunpack.c.l.b16 %v640
    %v1150 = vunpack.c.h.b16 %v640
    %v1151 = vunpack.c.l.b16 %v641
    %v1152 = vunpack.c.h.b16 %v641
    %v1153 = vunpack.c.l.b16 %v642
    %v1154 = vunpack.c.h.b16 %v642
    %v1155 = vunpack.c.l.b16 %v643
    %v1156 = vunpack.c.h.b16 %v643
    %v1157 = vunpack.c.l.b16 %v644
    %v1158 = vunpack.c.h.b16 %v644
    %v1159 = vunpack.c.l.b16 %v645
    %v1160 = vunpack.c.h.b16 %v645
    %v1161 = vunpack.c.l.b16 %v646
    %v1162 = vunpack.c.h.b16 %v646
    %v1163 = vunpack.c.l.b16 %v647
    %v1164 = vunpack.c.h.b16 %v647
    %v1165 = vunpack.c.l.b16 %v648
    %v1166 = vunpack.c.h.b16 %v648
    %v1167 = vunpack.c.l.b16 %v649
    %v1168 = vunpack.c.h.b16 %v649
    %v1169 = vunpack.c.l.b16 %v650
    %v1170 = vunpack.c.h.b16 %v650
    %v1171 = vunpack.c.l.b16 %v651
    %v1172 = vunpack.c.h.b16 %v651
    %v1173 = vunpack.c.l.b16 %v652
    %v1174 = vunpack.c.h.b16 %v652
    %v1175 = vunpack.c.l.b16 %v653
    %v1176 = vunpack.c.h.b16 %v653
    %v1177 = vunpack.c.l.b16 %v654
    %v1178 = vunpack.c.h.b16 %v654
    %v1179 = vunpack.c.l.b16 %v655
    %v1180 = vunpack.c.h.b16 %v655
    %v1181 = vunpack.c.l.b16 %v656
    %v1182 = vunpack.c.h.b16 %v656
    %v1183 = vunpack.c.l.b16 %v657
    %v1184 = vunpack.c.h.b16 %v657
    %v1185 = vunpack.c.l.b16 %v658
    %v1186 = vunpack.c.h.b16 %v658
    %v1187 = vunpack.c.l.b16 %v659
    %v1188 = vunpack.c.h.b16 %v659
    %v1189 = vunpack.c.l.b16 %v660
    %v1190 = vunpack.c.h.b16 %v660
    %v1191 = vunpack.c.l.b16 %v661
    %v1192 = vunpack.c.h.b16 %v661
    %v1193 = vunpack.c.l.b16 %v662
    %v1194 = vunpack.c.h.b16 %v662
    %v1195 = vunpack.c.l.b16 %v663
    %v1196 = vunpack.c.h.b16 %v663
    %v1197 = vunpack.c.l.b16 %v664
    %v1198 = vunpack.c.h.b16 %v664
    %v1199 = vunpack.c.l.b16 %v665
    %v1200 = vunpack.c.h.b16 %v665
    %v1201 = vunpack.c.l.b16 %v666
    %v1202 = vunpack.c.h.b16 %v666
    %v1203 = vunpack.c.l.b16 %v667
    %v1204 = vunpack.c.h.b16 %v667
    %v1205 = vunpack.c.l.b16 %v668
    %v1206 = vunpack.c.h.b16 %v668
    %v1207 = vunpack.c.l.b16 %v669
    %v1208 = vunpack.c.h.b16 %v669
    %v1209 = vunpack.c.l.b16 %v670
    %v1210 = vunpack.c.h.b16 %v670
    %v1211 = vunpack.c.l.b16 %v671
    %v1212 = vunpack.c.h.b16 %v671
    %v1213 = vunpack.c.l.b16 %v672
    %v1214 = vunpack.c.h.b16 %v672
    %v1215 = vunpack.c.l.b16 %v673
    %v1216 = vunpack.c.h.b16 %v673
    %v1217 = vunpack.c.l.b16 %v674
    %v1218 = vunpack.c.h.b16 %v674
    %v1219 = vunpack.c.l.b16 %v675
    %v1220 = vunpack.c.h.b16 %v675
    %v1221 = vunpack.c.l.b16 %v676
    %v1222 = vunpack.c.h.b16 %v676
    %v1223 = vunpack.c.l.b16 %v677
    %v1224 = vunpack.c.h.b16 %v677
    %v1225 = vunpack.c.l.b16 %v678
    %v1226 = vunpack.c.h.b16 %v678
    %v1227 = vunpack.c.l.b16 %v679
    %v1228 = vunpack.c.h.b16 %v679
    %v1229 = vunpack.c.l.b16 %v680
    %v1230 = vunpack.c.h.b16 %v680
    %v1231 = vunpack.c.l.b16 %v681
    %v1232 = vunpack.c.h.b16 %v681
    %v1233 = vunpack.c.l.b16 %v682
    %v1234 = vunpack.c.h.b16 %v682
    %v1235 = vunpack.c.l.b16 %v683
    %v1236 = vunpack.c.h.b16 %v683
    %v1237 = vunpack.c.l.b16 %v684
    %v1238 = vunpack.c.h.b16 %v684
    %v1239 = vunpack.c.l.b16 %v685
    %v1240 = vunpack.c.h.b16 %v685
    %v1241 = vunpack.c.l.b16 %v686
    %v1242 = vunpack.c.h.b16 %v686
    %v1243 = vunpack.c.l.b16 %v687
    %v1244 = vunpack.c.h.b16 %v687
    %v1245 = vunpack.c.l.b16 %v688
    %v1246 = vunpack.c.h.b16 %v688
    %v1247 = vunpack.c.l.b16 %v689
    %v1248 = vunpack.c.h.b16 %v689
    %v1249 = vunpack.c.l.b16 %v690
    %v1250 = vunpack.c.h.b16 %v690
    %v1251 = vunpack.c.l.b16 %v691
    %v1252 = vunpack.c.h.b16 %v691
    %v1253 = vunpack.c.l.b16 %v692
    %v1254 = vunpack.c.h.b16 %v692
    %v1255 = vunpack.c.l.b16 %v693
    %v1256 = vunpack.c.h.b16 %v693
    %v1257 = vunpack.c.l.b16 %v694
    %v1258 = vunpack.c.h.b16 %v694
    %v1259 = vunpack.c.l.b16 %v695
    %v1260 = vunpack.c.h.b16 %v695
    %v1261 = vunpack.c.l.b16 %v696
    %v1262 = vunpack.c.h.b16 %v696
    %v1263 = vunpack.c.l.b16 %v697
    %v1264 = vunpack.c.h.b16 %v697
    %v1265 = vunpack.c.l.b16 %v698
    %v1266 = vunpack.c.h.b16 %v698
    %v1267 = vunpack.c.l.b16 %v699
    %v1268 = vunpack.c.h.b16 %v699
    %v1269 = vunpack.c.l.b16 %v700
    %v1270 = vunpack.c.h.b16 %v700
    %v1271 = vunpack.c.l.b16 %v701
    %v1272 = vunpack.c.h.b16 %v701
    %v1273 = vunpack.c.l.b16 %v702
    %v1274 = vunpack.c.h.b16 %v702
    %v1275 = vunpack.c.l.b16 %v703
    %v1276 = vunpack.c.h.b16 %v703
    %v1277 = vunpack.c.l.b16 %v704
    %v1278 = vunpack.c.h.b16 %v704
    %v1279 = vunpack.c.l.b16 %v705
    %v1280 = vunpack.c.h.b16 %v705
    %v1281 = vunpack.c.l.b16 %v706
    %v1282 = vunpack.c.h.b16 %v706
    %v1283 = vunpack.c.l.b16 %v707
    %v1284 = vunpack.c.h.b16 %v707
    %v1285 = vunpack.c.l.b16 %v708
    %v1286 = vunpack.c.h.b16 %v708
    %v1287 = vunpack.c.l.b16 %v709
    %v1288 = vunpack.c.h.b16 %v709
    %v1289 = vunpack.c.l.b16 %v710
    %v1290 = vunpack.c.h.b16 %v710
    %v1291 = vunpack.c.l.b16 %v711
    %v1292 = vunpack.c.h.b16 %v711
    %v1293 = vunpack.c.l.b16 %v712
    %v1294 = vunpack.c.h.b16 %v712
    %v1295 = vunpack.c.l.b16 %v713
    %v1296 = vunpack.c.h.b16 %v713
    %v1297 = vunpack.c.l.b16 %v714
    %v1298 = vunpack.c.h.b16 %v714
    %v1299 = vunpack.c.l.b16 %v715
    %v1300 = vunpack.c.h.b16 %v715
    %v1301 = vunpack.c.l.b16 %v716
    %v1302 = vunpack.c.h.b16 %v716
    %v1303 = vunpack.c.l.b16 %v717
    %v1304 = vunpack.c.h.b16 %v717
    %v1305 = vunpack.c.l.b16 %v718
    %v1306 = vunpack.c.h.b16 %v718
    %v1307 = vunpack.c.l.b16 %v719
    %v1308 = vunpack.c.h.b16 %v719
    %v1309 = vunpack.c.l.b16 %v720
    %v1310 = vunpack.c.h.b16 %v720
    %v1311 = vunpack.c.l.b16 %v721
    %v1312 = vunpack.c.h.b16 %v721
    %v1313 = vunpack.c.l.b16 %v722
    %v1314 = vunpack.c.h.b16 %v722
    %v1315 = vunpack.c.l.b16 %v723
    %v1316 = vunpack.c.h.b16 %v723
    %v1317 = vunpack.c.l.b16 %v724
    %v1318 = vunpack.c.h.b16 %v724
    %v1319 = vunpack.c.l.b16 %v725
    %v1320 = vunpack.c.h.b16 %v725
    %v1321 = vunpack.c.l.b16 %v726
    %v1322 = vunpack.c.h.b16 %v726
    %v1323 = vunpack.c.l.b16 %v727
    %v1324 = vunpack.c.h.b16 %v727
    %v1325 = vunpack.c.l.b16 %v728
    %v1326 = vunpack.c.h.b16 %v728
    %v1327 = vunpack.c.l.b16 %v729
    %v1328 = vunpack.c.h.b16 %v729
    %v1329 = vunpack.c.l.b16 %v730
    %v1330 = vunpack.c.h.b16 %v730
    %v1331 = vunpack.c.l.b16 %v731
    %v1332 = vunpack.c.h.b16 %v731
    %v1333 = vunpack.c.l.b16 %v732
    %v1334 = vunpack.c.h.b16 %v732
    %v1335 = vunpack.c.l.b16 %v733
    %v1336 = vunpack.c.h.b16 %v733
    %v1337 = vunpack.c.l.b16 %v734
    %v1338 = vunpack.c.h.b16 %v734
    %v1339 = vunpack.c.l.b16 %v735
    %v1340 = vunpack.c.h.b16 %v735
    %v1341 = vunpack.c.l.b16 %v736
    %v1342 = vunpack.c.h.b16 %v736
    %v1343 = vunpack.c.l.b16 %v737
    %v1344 = vunpack.c.h.b16 %v737
    %v1345 = vunpack.c.l.b16 %v738
    %v1346 = vunpack.c.h.b16 %v738
    %v1347 = vpack.c.b16 %v969, %v963
    %v1348 = vpack.c.b16 %v970, %v964
    %v1349 = vpack.c.b16 %v971, %v965
    %v1350 = vpack.c.b16 %v972, %v966
    %v1351 = vpack.c.b16 %v973, %v967
    %v1352 = vpack.c.b16 %v974, %v968
    %v1353 = vpack.c.b16 %v981, %v975
    %v1354 = vpack.c.b16 %v982, %v976
    %v1355 = vpack.c.b16 %v983, %v977
    %v1356 = vpack.c.b16 %v984, %v978
    %v1357 = vpack.c.b16 %v985, %v979
    %v1358 = vpack.c.b16 %v986, %v980
    %v1359 = vpack.c.b16 %v993, %v987
    %v1360 = vpack.c.b16 %v994, %v988
    %v1361 = vpack.c.b16 %v995, %v989
    %v1362 = vpack.c.b16 %v996, %v990
    %v1363 = vpack.c.b16 %v997, %v991
    %v1364 = vpack.c.b16 %v998, %v992
    %v1365 = vpack.c.b16 %v1005, %v999
    %v1366 = vpack.c.b16 %v1006, %v1000
    %v1367 = vpack.c.b16 %v1007, %v1001
    %v1368 = vpack.c.b16 %v1008, %v1002
    %v1369 = vpack.c.b16 %v1009, %v1003
    %v1370 = vpack.c.b16 %v1010, %v1004
    %v1371 = vpack.c.b16 %v1017, %v1011
    %v1372 = vpack.c.b16 %v1018, %v1012
    %v1373 = vpack.c.b16 %v1019, %v1013
    %v1374 = vpack.c.b16 %v1020, %v1014
    %v1375 = vpack.c.b16 %v1021, %v1015
    %v1376 = vpack.c.b16 %v1022, %v1016
    %v1377 = vpack.c.b16 %v1029, %v1023
    %v1378 = vpack.c.b16 %v1030, %v1024
    %v1379 = vpack.c.b16 %v1031, %v1025
    %v1380 = vpack.c.b16 %v1032, %v1026
    %v1381 = vpack.c.b16 %v1033, %v1027
    %v1382 = vpack.c.b16 %v1034, %v1028
    %v1383 = vpack.c.b16 %v1041, %v1035
    %v1384 = vpack.c.b16 %v1042, %v1036
    %v1385 = vpack.c.b16 %v1043, %v1037
    %v1386 = vpack.c.b16 %v1044, %v1038
    %v1387 = vpack.c.b16 %v1045, %v1039
    %v1388 = vpack.c.b16 %v1046, %v1040
    %v1389 = vpack.c.b16 %v1053, %v1047
    %v1390 = vpack.c.b16 %v1054, %v1048
    %v1391 = vpack.c.b16 %v1055, %v1049
    %v1392 = vpack.c.b16 %v1056, %v1050
    %v1393 = vpack.c.b16 %v1057, %v1051
    %v1394 = vpack.c.b16 %v1058, %v1052
    %v1395 = vpack.c.b16 %v1065, %v1059
    %v1396 = vpack.c.b16 %v1066, %v1060
    %v1397 = vpack.c.b16 %v1067, %v1061
    %v1398 = vpack.c.b16 %v1068, %v1062
    %v1399 = vpack.c.b16 %v1069, %v1063
    %v1400 = vpack.c.b16 %v1070, %v1064
    %v1401 = vpack.c.b16 %v1077, %v1071
    %v1402 = vpack.c.b16 %v1078, %v1072
    %v1403 = vpack.c.b16 %v1079, %v1073
    %v1404 = vpack.c.b16 %v1080, %v1074
    %v1405 = vpack.c.b16 %v1081, %v1075
    %v1406 = vpack.c.b16 %v1082, %v1076
    %v1407 = vpack.c.b16 %v1089, %v1083
    %v1408 = vpack.c.b16 %v1090, %v1084
    %v1409 = vpack.c.b16 %v1091, %v1085
    %v1410 = vpack.c.b16 %v1092, %v1086
    %v1411 = vpack.c.b16 %v1093, %v1087
    %v1412 = vpack.c.b16 %v1094, %v1088
    %v1413 = vpack.c.b16 %v1101, %v1095
    %v1414 = vpack.c.b16 %v1102, %v1096
    %v1415 = vpack.c.b16 %v1103, %v1097
    %v1416 = vpack.c.b16 %v1104, %v1098
    %v1417 = vpack.c.b16 %v1105, %v1099
    %v1418 = vpack.c.b16 %v1106, %v1100
    %v1419 = vpack.c.b16 %v1113, %v1107
    %v1420 = vpack.c.b16 %v1114, %v1108
    %v1421 = vpack.c.b16 %v1115, %v1109
    %v1422 = vpack.c.b16 %v1116, %v1110
    %v1423 = vpack.c.b16 %v1117, %v1111
    %v1424 = vpack.c.b16 %v1118, %v1112
    %v1425 = vpack.c.b16 %v1125, %v1119
    %v1426 = vpack.c.b16 %v1126, %v1120
    %v1427 = vpack.c.b16 %v1127, %v1121
    %v1428 = vpack.c.b16 %v1128, %v1122
    %v1429 = vpack.c.b16 %v1129, %v1123
    %v1430 = vpack.c.b16 %v1130, %v1124
    %v1431 = vpack.c.b16 %v1137, %v1131
    %v1432 = vpack.c.b16 %v1138, %v1132
    %v1433 = vpack.c.b16 %v1139, %v1133
    %v1434 = vpack.c.b16 %v1140, %v1134
    %v1435 = vpack.c.b16 %v1141, %v1135
    %v1436 = vpack.c.b16 %v1142, %v1136
    %v1437 = vpack.c.b16 %v1149, %v1143
    %v1438 = vpack.c.b16 %v1150, %v1144
    %v1439 = vpack.c.b16 %v1151, %v1145
    %v1440 = vpack.c.b16 %v1152, %v1146
    %v1441 = vpack.c.b16 %v1153, %v1147
    %v1442 = vpack.c.b16 %v1154, %v1148
    %v1443 = vpack.c.b16 %v1161, %v1155
    %v1444 = vpack.c.b16 %v1162, %v1156
    %v1445 = vpack.c.b16 %v1163, %v1157
    %v1446 = vpack.c.b16 %v1164, %v1158
    %v1447 = vpack.c.b16 %v1165, %v1159
    %v1448 = vpack.c.b16 %v1166, %v1160
    %v1449 = vpack.c.b16 %v1173, %v1167
    %v1450 = vpack.c.b16 %v1174, %v1168
    %v1451 = vpack.c.b16 %v1175, %v1169
    %v1452 = vpack.c.b16 %v1176, %v1170
    %v1453 = vpack.c.b16 %v1177, %v1171
    %v1454 = vpack.c.b16 %v1178, %v1172
    %v1455 = vpack.c.b16 %v1185, %v1179
    %v1456 = vpack.c.b16 %v1186, %v1180
    %v1457 = vpack.c.b16 %v1187, %v1181
    %v1458 = vpack.c.b16 %v1188, %v1182
    %v1459 = vpack.c.b16 %v1189, %v1183
    %v1460 = vpack.c.b16 %v1190, %v1184
    %v1461 = vpack.c.b16 %v1197, %v1191
    %v1462 = vpack.c.b16 %v1198, %v1192
    %v1463 = vpack.c.b16 %v1199, %v1193
    %v1464 = vpack.c.b16 %v1200, %v1194
    %v1465 = vpack.c.b16 %v1201, %v1195
    %v1466 = vpack.c.b16 %v1202, %v1196
    %v1467 = vpack.c.b16 %v1209, %v1203
    %v1468 = vpack.c.b16 %v1210, %v1204
    %v1469 = vpack.c.b16 %v1211, %v1205
    %v1470 = vpack.c.b16 %v1212, %v1206
    %v1471 = vpack.c.b16 %v1213, %v1207
    %v1472 = vpack.c.b16 %v1214, %v1208
    %v1473 = vpack.c.b16 %v1221, %v1215
    %v1474 = vpack.c.b16 %v1222, %v1216
    %v1475 = vpack.c.b16 %v1223, %v1217
    %v1476 = vpack.c.b16 %v1224, %v1218
    %v1477 = vpack.c.b16 %v1225, %v1219
    %v1478 = vpack.c.b16 %v1226, %v1220
    %v1479 = vpack.c.b16 %v1233, %v1227
    %v1480 = vpack.c.b16 %v1234, %v1228
    %v1481 = vpack.c.b16 %v1235, %v1229
    %v1482 = vpack.c.b16 %v1236, %v1230
    %v1483 = vpack.c.b16 %v1237, %v1231
    %v1484 = vpack.c.b16 %v1238, %v1232
    %v1485 = vpack.c.b16 %v1245, %v1239
    %v1486 = vpack.c.b16 %v1246, %v1240
    %v1487 = vpack.c.b16 %v1247, %v1241
    %v1488 = vpack.c.b16 %v1248, %v1242
    %v1489 = vpack.c.b16 %v1249, %v1243
    %v1490 = vpack.c.b16 %v1250, %v1244
    %v1491 = vpack.c.b16 %v1257, %v1251
    %v1492 = vpack.c.b16 %v1258, %v1252
    %v1493 = vpack.c.b16 %v1259, %v1253
    %v1494 = vpack.c.b16 %v1260, %v1254
    %v1495 = vpack.c.b16 %v1261, %v1255
    %v1496 = vpack.c.b16 %v1262, %v1256
    %v1497 = vpack.c.b16 %v1269, %v1263
    %v1498 = vpack.c.b16 %v1270, %v1264
    %v1499 = vpack.c.b16 %v1271, %v1265
    %v1500 = vpack.c.b16 %v1272, %v1266
    %v1501 = vpack.c.b16 %v1273, %v1267
    %v1502 = vpack.c.b16 %v1274, %v1268
    %v1503 = vpack.c.b16 %v1281, %v1275
    %v1504 = vpack.c.b16 %v1282, %v1276
    %v1505 = vpack.c.b16 %v1283, %v1277
    %v1506 = vpack.c.b16 %v1284, %v1278
    %v1507 = vpack.c.b16 %v1285, %v1279
    %v1508 = vpack.c.b16 %v1286, %v1280
    %v1509 = vpack.c.b16 %v1293, %v1287
    %v1510 = vpack.c.b16 %v1294, %v1288
    %v1511 = vpack.c.b16 %v1295, %v1289
    %v1512 = vpack.c.b16 %v1296, %v1290
    %v1513 = vpack.c.b16 %v1297, %v1291
    %v1514 = vpack.c.b16 %v1298, %v1292
    %v1515 = vpack.c.b16 %v1305, %v1299
    %v1516 = vpack.c.b16 %v1306, %v1300
    %v1517 = vpack.c.b16 %v1307, %v1301
    %v1518 = vpack.c.b16 %v1308, %v1302
    %v1519 = vpack.c.b16 %v1309, %v1303
    %v1520 = vpack.c.b16 %v1310, %v1304
    %v1521 = vpack.c.b16 %v1317, %v1311
    %v1522 = vpack.c.b16 %v1318, %v1312
    %v1523 = vpack.c.b16 %v1319, %v1313
    %v1524 = vpack.c.b16 %v1320, %v1314
    %v1525 = vpack.c.b16 %v1321, %v1315
    %v1526 = vpack.c.b16 %v1322, %v1316
    %v1527 = vpack.c.b16 %v1329, %v1323
    %v1528 = vpack.c.b16 %v1330, %v1324
    %v1529 = vpack.c.b16 %v1331, %v1325
    %v1530 = vpack.c.b16 %v1332, %v1326
    %v1531 = vpack.c.b16 %v1333, %v1327
    %v1532 = vpack.c.b16 %v1334, %v1328
    %v1533 = vpack.c.b16 %v1341, %v1335
    %v1534 = vpack.c.b16 %v1342, %v1336
    %v1535 = vpack.c.b16 %v1343, %v1337
    %v1536 = vpack.c.b16 %v1344, %v1338
    %v1537 = vpack.c.b16 %v1345, %v1339
    %v1538 = vpack.c.b16 %v1346, %v1340
    %1731 = vmatprep.subr.bf16.mxu0 %v1390
    %1732 = vmatpush1.bf16.msra.mxu0 %v1389
    %1733 = vmatprep.subr.bf16.mxu0 %v1384
    %1734 = vmatpush1.bf16.msra.mxu0 %v1383
    %1735 = vmatprep.subr.bf16.mxu0 %v1378
    %1736 = vmatpush1.bf16.msra.mxu0 %v1377
    %1737 = vmatprep.subr.bf16.mxu0 %v1372
    %1738 = vmatpush1.bf16.msra.mxu0 %v1371
    %1739 = vmatprep.subr.bf16.mxu0 %v1366
    %1740 = vmatpush1.bf16.msra.mxu0 %v1365
    %1741 = vmatprep.subr.bf16.mxu0 %v1360
    %1742 = vmatpush1.bf16.msra.mxu0 %v1359
    %1743 = vmatprep.subr.bf16.mxu0 %v1354
    %1744 = vmatpush1.bf16.msra.mxu0 %v1353
    %1745 = vmatprep.subr.bf16.mxu0 %v1348
    %1746 = vmatpush1.bf16.msra.mxu0 %v1347
    %1747 = vmatprep.subr.bf16.mxu0 %v1438
    %1748 = vmatpush2.bf16.msra.mxu0 %v1437
    %1749 = vmatprep.subr.bf16.mxu0 %v1432
    %1750 = vmatpush2.bf16.msra.mxu0 %v1431
    %1751 = vmatprep.subr.bf16.mxu0 %v1426
    %1752 = vmatpush2.bf16.msra.mxu0 %v1425
    %1753 = vmatprep.subr.bf16.mxu0 %v1420
    %1754 = vmatpush2.bf16.msra.mxu0 %v1419
    %1755 = vmatprep.subr.bf16.mxu0 %v1414
    %1756 = vmatpush2.bf16.msra.mxu0 %v1413
    %1757 = vmatprep.subr.bf16.mxu0 %v1408
    %1758 = vmatpush2.bf16.msra.mxu0 %v1407
    %1759 = vmatprep.subr.bf16.mxu0 %v1402
    %1760 = vmatpush2.bf16.msra.mxu0 %v1401
    %1761 = vmatprep.subr.bf16.mxu0 %v1396
    %1762 = vmatpush2.bf16.msra.mxu0 %v1395
    %1763 = vmatprep.mubr.bf16.mxu0 %v544
    %1764 = vmatmul.mubr.bf16.gmra.mxu0 %v543
    %v1765 = vpop.f32.mrf.mxu0
    %v1766 = vadd.f32 %v744, %v1765
    %v1767 = vpop.f32.mrf.mxu0
    %v1768 = vadd.f32 %v748, %v1767
    %v1769 = vpop.f32.mrf.mxu0
    %v1770 = vpop.f32.mrf.mxu0
    %1771 = vdwg.mxu0
    %1772 = vmatprep.subr.bf16.mxu0 %v1486
    %1773 = vmatpush1.bf16.msra.mxu0 %v1485
    %1774 = vmatprep.subr.bf16.mxu0 %v1480
    %1775 = vmatpush1.bf16.msra.mxu0 %v1479
    %1776 = vmatprep.subr.bf16.mxu0 %v1474
    %1777 = vmatpush1.bf16.msra.mxu0 %v1473
    %1778 = vmatprep.subr.bf16.mxu0 %v1468
    %1779 = vmatpush1.bf16.msra.mxu0 %v1467
    %1780 = vmatprep.subr.bf16.mxu0 %v1462
    %1781 = vmatpush1.bf16.msra.mxu0 %v1461
    %1782 = vmatprep.subr.bf16.mxu0 %v1456
    %1783 = vmatpush1.bf16.msra.mxu0 %v1455
    %1784 = vmatprep.subr.bf16.mxu0 %v1450
    %1785 = vmatpush1.bf16.msra.mxu0 %v1449
    %1786 = vmatprep.subr.bf16.mxu0 %v1444
    %1787 = vmatpush1.bf16.msra.mxu0 %v1443
    %1788 = vmatprep.subr.bf16.mxu0 %v1534
    %1789 = vmatpush2.bf16.msra.mxu0 %v1533
    %1790 = vmatprep.subr.bf16.mxu0 %v1528
    %1791 = vmatpush2.bf16.msra.mxu0 %v1527
    %1792 = vmatprep.subr.bf16.mxu0 %v1522
    %1793 = vmatpush2.bf16.msra.mxu0 %v1521
    %1794 = vmatprep.subr.bf16.mxu0 %v1516
    %1795 = vmatpush2.bf16.msra.mxu0 %v1515
    %1796 = vmatprep.subr.bf16.mxu0 %v1510
    %1797 = vmatpush2.bf16.msra.mxu0 %v1509
    %1798 = vmatprep.subr.bf16.mxu0 %v1504
    %1799 = vmatpush2.bf16.msra.mxu0 %v1503
    %1800 = vmatprep.subr.bf16.mxu0 %v1498
    %1801 = vmatpush2.bf16.msra.mxu0 %v1497
    %1802 = vmatprep.subr.bf16.mxu0 %v1492
    %1803 = vmatpush2.bf16.msra.mxu0 %v1491
    %1804 = vmatprep.mubr.bf16.mxu0 %v546
    %1805 = vmatmul.mubr.bf16.gmra.mxu0 %v545
    %v1806 = vpop.f32.mrf.mxu0
    %v1807 = vadd.f32 %v1766, %v1806
    %v1808 = vpop.f32.mrf.mxu0
    %v1809 = vadd.f32 %v1768, %v1808
    %v1810 = vpop.f32.mrf.mxu0
    %v1811 = vpop.f32.mrf.mxu0
    %1812 = vdwg.mxu0
    %1813 = vmatprep.subr.bf16.mxu0 %v1392
    %1814 = vmatpush1.bf16.msra.mxu0 %v1391
    %1815 = vmatprep.subr.bf16.mxu0 %v1386
    %1816 = vmatpush1.bf16.msra.mxu0 %v1385
    %1817 = vmatprep.subr.bf16.mxu0 %v1380
    %1818 = vmatpush1.bf16.msra.mxu0 %v1379
    %1819 = vmatprep.subr.bf16.mxu0 %v1374
    %1820 = vmatpush1.bf16.msra.mxu0 %v1373
    %1821 = vmatprep.subr.bf16.mxu0 %v1368
    %1822 = vmatpush1.bf16.msra.mxu0 %v1367
    %1823 = vmatprep.subr.bf16.mxu0 %v1362
    %1824 = vmatpush1.bf16.msra.mxu0 %v1361
    %1825 = vmatprep.subr.bf16.mxu0 %v1356
    %1826 = vmatpush1.bf16.msra.mxu0 %v1355
    %1827 = vmatprep.subr.bf16.mxu0 %v1350
    %1828 = vmatpush1.bf16.msra.mxu0 %v1349
    %1829 = vmatprep.subr.bf16.mxu0 %v1440
    %1830 = vmatpush2.bf16.msra.mxu0 %v1439
    %1831 = vmatprep.subr.bf16.mxu0 %v1434
    %1832 = vmatpush2.bf16.msra.mxu0 %v1433
    %1833 = vmatprep.subr.bf16.mxu0 %v1428
    %1834 = vmatpush2.bf16.msra.mxu0 %v1427
    %1835 = vmatprep.subr.bf16.mxu0 %v1422
    %1836 = vmatpush2.bf16.msra.mxu0 %v1421
    %1837 = vmatprep.subr.bf16.mxu0 %v1416
    %1838 = vmatpush2.bf16.msra.mxu0 %v1415
    %1839 = vmatprep.subr.bf16.mxu0 %v1410
    %1840 = vmatpush2.bf16.msra.mxu0 %v1409
    %1841 = vmatprep.subr.bf16.mxu0 %v1404
    %1842 = vmatpush2.bf16.msra.mxu0 %v1403
    %1843 = vmatprep.subr.bf16.mxu0 %v1398
    %1844 = vmatpush2.bf16.msra.mxu0 %v1397
    %1845 = vmatprep.mubr.bf16.mxu0 %v544
    %1846 = vmatmul.mubr.bf16.gmra.mxu0 %v543
    %v1847 = vpop.f32.mrf.mxu0
    %v1848 = vadd.f32 %v752, %v1847
    %v1849 = vpop.f32.mrf.mxu0
    %v1850 = vadd.f32 %v756, %v1849
    %v1851 = vpop.f32.mrf.mxu0
    %v1852 = vpop.f32.mrf.mxu0
    %1853 = vdwg.mxu0
    %1854 = vmatprep.subr.bf16.mxu0 %v1488
    %1855 = vmatpush1.bf16.msra.mxu0 %v1487
    %1856 = vmatprep.subr.bf16.mxu0 %v1482
    %1857 = vmatpush1.bf16.msra.mxu0 %v1481
    %1858 = vmatprep.subr.bf16.mxu0 %v1476
    %1859 = vmatpush1.bf16.msra.mxu0 %v1475
    %1860 = vmatprep.subr.bf16.mxu0 %v1470
    %1861 = vmatpush1.bf16.msra.mxu0 %v1469
    %1862 = vmatprep.subr.bf16.mxu0 %v1464
    %1863 = vmatpush1.bf16.msra.mxu0 %v1463
    %1864 = vmatprep.subr.bf16.mxu0 %v1458
    %1865 = vmatpush1.bf16.msra.mxu0 %v1457
    %1866 = vmatprep.subr.bf16.mxu0 %v1452
    %1867 = vmatpush1.bf16.msra.mxu0 %v1451
    %1868 = vmatprep.subr.bf16.mxu0 %v1446
    %1869 = vmatpush1.bf16.msra.mxu0 %v1445
    %1870 = vmatprep.subr.bf16.mxu0 %v1536
    %1871 = vmatpush2.bf16.msra.mxu0 %v1535
    %1872 = vmatprep.subr.bf16.mxu0 %v1530
    %1873 = vmatpush2.bf16.msra.mxu0 %v1529
    %1874 = vmatprep.subr.bf16.mxu0 %v1524
    %1875 = vmatpush2.bf16.msra.mxu0 %v1523
    %1876 = vmatprep.subr.bf16.mxu0 %v1518
    %1877 = vmatpush2.bf16.msra.mxu0 %v1517
    %1878 = vmatprep.subr.bf16.mxu0 %v1512
    %1879 = vmatpush2.bf16.msra.mxu0 %v1511
    %1880 = vmatprep.subr.bf16.mxu0 %v1506
    %1881 = vmatpush2.bf16.msra.mxu0 %v1505
    %1882 = vmatprep.subr.bf16.mxu0 %v1500
    %1883 = vmatpush2.bf16.msra.mxu0 %v1499
    %1884 = vmatprep.subr.bf16.mxu0 %v1494
    %1885 = vmatpush2.bf16.msra.mxu0 %v1493
    %1886 = vmatprep.mubr.bf16.mxu0 %v546
    %1887 = vmatmul.mubr.bf16.gmra.mxu0 %v545
    %v1888 = vpop.f32.mrf.mxu0
    %v1889 = vadd.f32 %v1848, %v1888
    %v1890 = vpop.f32.mrf.mxu0
    %v1891 = vadd.f32 %v1850, %v1890
    %v1892 = vpop.f32.mrf.mxu0
    %v1893 = vpop.f32.mrf.mxu0
    %1894 = vdwg.mxu0
    %1895 = vmatprep.subr.bf16.mxu0 %v1394
    %1896 = vmatpush1.bf16.msra.mxu0 %v1393
    %1897 = vmatprep.subr.bf16.mxu0 %v1388
    %1898 = vmatpush1.bf16.msra.mxu0 %v1387
    %1899 = vmatprep.subr.bf16.mxu0 %v1382
    %1900 = vmatpush1.bf16.msra.mxu0 %v1381
    %1901 = vmatprep.subr.bf16.mxu0 %v1376
    %1902 = vmatpush1.bf16.msra.mxu0 %v1375
    %1903 = vmatprep.subr.bf16.mxu0 %v1370
    %1904 = vmatpush1.bf16.msra.mxu0 %v1369
    %1905 = vmatprep.subr.bf16.mxu0 %v1364
    %1906 = vmatpush1.bf16.msra.mxu0 %v1363
    %1907 = vmatprep.subr.bf16.mxu0 %v1358
    %1908 = vmatpush1.bf16.msra.mxu0 %v1357
    %1909 = vmatprep.subr.bf16.mxu0 %v1352
    %1910 = vmatpush1.bf16.msra.mxu0 %v1351
    %1911 = vmatprep.subr.bf16.mxu0 %v1442
    %1912 = vmatpush2.bf16.msra.mxu0 %v1441
    %1913 = vmatprep.subr.bf16.mxu0 %v1436
    %1914 = vmatpush2.bf16.msra.mxu0 %v1435
    %1915 = vmatprep.subr.bf16.mxu0 %v1430
    %1916 = vmatpush2.bf16.msra.mxu0 %v1429
    %1917 = vmatprep.subr.bf16.mxu0 %v1424
    %1918 = vmatpush2.bf16.msra.mxu0 %v1423
    %1919 = vmatprep.subr.bf16.mxu0 %v1418
    %1920 = vmatpush2.bf16.msra.mxu0 %v1417
    %1921 = vmatprep.subr.bf16.mxu0 %v1412
    %1922 = vmatpush2.bf16.msra.mxu0 %v1411
    %1923 = vmatprep.subr.bf16.mxu0 %v1406
    %1924 = vmatpush2.bf16.msra.mxu0 %v1405
    %1925 = vmatprep.subr.bf16.mxu0 %v1400
    %1926 = vmatpush2.bf16.msra.mxu0 %v1399
    %1927 = vmatprep.mubr.bf16.mxu0 %v544
    %1928 = vmatmul.mubr.bf16.gmra.mxu0 %v543
    %v1929 = vpop.f32.mrf.mxu0
    %v1930 = vadd.f32 %v760, %v1929
    %v1931 = vpop.f32.mrf.mxu0
    %v1932 = vadd.f32 %v764, %v1931
    %v1933 = vpop.f32.mrf.mxu0
    %v1934 = vpop.f32.mrf.mxu0
    %1935 = vdwg.mxu0
    %1936 = vmatprep.subr.bf16.mxu0 %v1490
    %1937 = vmatpush1.bf16.msra.mxu0 %v1489
    %1938 = vmatprep.subr.bf16.mxu0 %v1484
    %1939 = vmatpush1.bf16.msra.mxu0 %v1483
    %1940 = vmatprep.subr.bf16.mxu0 %v1478
    %1941 = vmatpush1.bf16.msra.mxu0 %v1477
    %1942 = vmatprep.subr.bf16.mxu0 %v1472
    %1943 = vmatpush1.bf16.msra.mxu0 %v1471
    %1944 = vmatprep.subr.bf16.mxu0 %v1466
    %1945 = vmatpush1.bf16.msra.mxu0 %v1465
    %1946 = vmatprep.subr.bf16.mxu0 %v1460
    %1947 = vmatpush1.bf16.msra.mxu0 %v1459
    %1948 = vmatprep.subr.bf16.mxu0 %v1454
    %1949 = vmatpush1.bf16.msra.mxu0 %v1453
    %1950 = vmatprep.subr.bf16.mxu0 %v1448
    %1951 = vmatpush1.bf16.msra.mxu0 %v1447
    %1952 = vmatprep.subr.bf16.mxu0 %v1538
    %1953 = vmatpush2.bf16.msra.mxu0 %v1537
    %1954 = vmatprep.subr.bf16.mxu0 %v1532
    %1955 = vmatpush2.bf16.msra.mxu0 %v1531
    %1956 = vmatprep.subr.bf16.mxu0 %v1526
    %1957 = vmatpush2.bf16.msra.mxu0 %v1525
    %1958 = vmatprep.subr.bf16.mxu0 %v1520
    %1959 = vmatpush2.bf16.msra.mxu0 %v1519
    %1960 = vmatprep.subr.bf16.mxu0 %v1514
    %1961 = vmatpush2.bf16.msra.mxu0 %v1513
    %1962 = vmatprep.subr.bf16.mxu0 %v1508
    %1963 = vmatpush2.bf16.msra.mxu0 %v1507
    %1964 = vmatprep.subr.bf16.mxu0 %v1502
    %1965 = vmatpush2.bf16.msra.mxu0 %v1501
    %1966 = vmatprep.subr.bf16.mxu0 %v1496
    %1967 = vmatpush2.bf16.msra.mxu0 %v1495
    %1968 = vmatprep.mubr.bf16.mxu0 %v546
    %1969 = vmatmul.mubr.bf16.gmra.mxu0 %v545
    %v1970 = vpop.f32.mrf.mxu0
    %v1971 = vadd.f32 %v1930, %v1970
    %v1972 = vpop.f32.mrf.mxu0
    %v1973 = vadd.f32 %v1932, %v1972
    %v1974 = vpop.f32.mrf.mxu0
    %v1975 = vpop.f32.mrf.mxu0
    %1976 = vdwg.mxu0
    %v1977 = vmax.f32 %v1807, 0.0
    %v1978 = vmax.f32 %v1809, 0.0
    %v1979 = vmax.f32 %v1889, 0.0
    %v1980 = vmax.f32 %v1891, 0.0
    %v1981 = vmax.f32 %v1971, 0.0
    %v1982 = vmax.f32 %v1973, 0.0
    %v1983 = vpack.c.bf16 %v1977, %v1977
    %v1984 = vpack.c.bf16 %v1978, %v1978
    %v1985 = vpack.c.bf16 %v1979, %v1979
    %v1986 = vpack.c.bf16 %v1980, %v1980
    %v1987 = vpack.c.bf16 %v1981, %v1981
    %v1988 = vpack.c.bf16 %v1982, %v1982
    %v1989 = vld [vmem:[#allocation10] sm:$0xf]
    %v1990 = vld [vmem:[#allocation10 + $0x4] sm:$0xf]
    %v1991 = vld [vmem:[#allocation10 + $0x8] sm:$0xf]
    %v1992 = vld [vmem:[#allocation10 + $0xc] sm:$0xf]
    %v1993 = vld [vmem:[#allocation10 + $0x10] sm:$0xf]
    %v1994 = vld [vmem:[#allocation10 + $0x14] sm:$0xf]
    %v1995 = vld [vmem:[#allocation10 + $0x18] sm:$0xf]
    %v1996 = vld [vmem:[#allocation10 + $0x1c] sm:$0xf]
    %v1997 = vld [vmem:[#allocation10 + $0x20] sm:$0xf]
    %v1998 = vld [vmem:[#allocation10 + $0x24] sm:$0xf]
    %v1999 = vld [vmem:[#allocation10 + $0x28] sm:$0xf]
    %v2000 = vld [vmem:[#allocation10 + $0x2c] sm:$0xf]
    %v2001 = vld [vmem:[#allocation10 + $0x30] sm:$0xf]
    %v2002 = vld [vmem:[#allocation10 + $0x34] sm:$0xf]
    %v2003 = vld [vmem:[#allocation10 + $0x38] sm:$0xf]
    %v2004 = vld [vmem:[#allocation10 + $0x3c] sm:$0xf]
    %v2005 = vld [vmem:[#allocation10 + $0x40] sm:$0xf]
    %v2006 = vld [vmem:[#allocation10 + $0x44] sm:$0xf]
    %v2007 = vld [vmem:[#allocation10 + $0x48] sm:$0xf]
    %v2008 = vld [vmem:[#allocation10 + $0x4c] sm:$0xf]
    %v2009 = vld [vmem:[#allocation10 + $0x50] sm:$0xf]
    %v2010 = vld [vmem:[#allocation10 + $0x54] sm:$0xf]
    %v2011 = vld [vmem:[#allocation10 + $0x58] sm:$0xf]
    %v2012 = vld [vmem:[#allocation10 + $0x5c] sm:$0xf]
    %v2013 = vld [vmem:[#allocation10 + $0x60] sm:$0xf]
    %v2014 = vld [vmem:[#allocation10 + $0x64] sm:$0xf]
    %v2015 = vld [vmem:[#allocation10 + $0x68] sm:$0xf]
    %v2016 = vld [vmem:[#allocation10 + $0x6c] sm:$0xf]
    %v2017 = vld [vmem:[#allocation10 + $0x70] sm:$0xf]
    %v2018 = vld [vmem:[#allocation10 + $0x74] sm:$0xf]
    %v2019 = vld [vmem:[#allocation10 + $0x78] sm:$0xf]
    %v2020 = vld [vmem:[#allocation10 + $0x7c] sm:$0xf]
    %v2021 = vld [vmem:[#allocation10 + $0x80] sm:$0xf]
    %v2022 = vld [vmem:[#allocation10 + $0x84] sm:$0xf]
    %v2023 = vld [vmem:[#allocation10 + $0x88] sm:$0xf]
    %v2024 = vld [vmem:[#allocation10 + $0x8c] sm:$0xf]
    %v2025 = vld [vmem:[#allocation10 + $0x90] sm:$0xf]
    %v2026 = vld [vmem:[#allocation10 + $0x94] sm:$0xf]
    %v2027 = vld [vmem:[#allocation10 + $0x98] sm:$0xf]
    %v2028 = vld [vmem:[#allocation10 + $0x9c] sm:$0xf]
    %v2029 = vld [vmem:[#allocation10 + $0xa0] sm:$0xf]
    %v2030 = vld [vmem:[#allocation10 + $0xa4] sm:$0xf]
    %v2031 = vld [vmem:[#allocation10 + $0xa8] sm:$0xf]
    %v2032 = vld [vmem:[#allocation10 + $0xac] sm:$0xf]
    %v2033 = vld [vmem:[#allocation10 + $0xb0] sm:$0xf]
    %v2034 = vld [vmem:[#allocation10 + $0xb4] sm:$0xf]
    %v2035 = vld [vmem:[#allocation10 + $0xb8] sm:$0xf]
    %v2036 = vld [vmem:[#allocation10 + $0xbc] sm:$0xf]
    %v2037 = vld [vmem:[#allocation10 + $0xc0] sm:$0xf]
    %v2038 = vld [vmem:[#allocation10 + $0xc4] sm:$0xf]
    %v2039 = vld [vmem:[#allocation10 + $0xc8] sm:$0xf]
    %v2040 = vld [vmem:[#allocation10 + $0xcc] sm:$0xf]
    %v2041 = vld [vmem:[#allocation10 + $0xd0] sm:$0xf]
    %v2042 = vld [vmem:[#allocation10 + $0xd4] sm:$0xf]
    %v2043 = vld [vmem:[#allocation10 + $0xd8] sm:$0xf]
    %v2044 = vld [vmem:[#allocation10 + $0xdc] sm:$0xf]
    %v2045 = vld [vmem:[#allocation10 + $0xe0] sm:$0xf]
    %v2046 = vld [vmem:[#allocation10 + $0xe4] sm:$0xf]
    %v2047 = vld [vmem:[#allocation10 + $0xe8] sm:$0xf]
    %v2048 = vld [vmem:[#allocation10 + $0xec] sm:$0xf]
    %v2049 = vld [vmem:[#allocation10 + $0xf0] sm:$0xf]
    %v2050 = vld [vmem:[#allocation10 + $0xf4] sm:$0xf]
    %v2051 = vld [vmem:[#allocation10 + $0xf8] sm:$0xf]
    %v2052 = vld [vmem:[#allocation10 + $0xfc] sm:$0xf]
    %v2053 = vld [vmem:[#allocation10 + $0x100] sm:$0xf]
    %v2054 = vld [vmem:[#allocation10 + $0x104] sm:$0xf]
    %v2055 = vld [vmem:[#allocation10 + $0x108] sm:$0xf]
    %v2056 = vld [vmem:[#allocation10 + $0x10c] sm:$0xf]
    %v2057 = vld [vmem:[#allocation10 + $0x110] sm:$0xf]
    %v2058 = vld [vmem:[#allocation10 + $0x114] sm:$0xf]
    %v2059 = vld [vmem:[#allocation10 + $0x118] sm:$0xf]
    %v2060 = vld [vmem:[#allocation10 + $0x11c] sm:$0xf]
    %v2061 = vld [vmem:[#allocation10 + $0x120] sm:$0xf]
    %v2062 = vld [vmem:[#allocation10 + $0x124] sm:$0xf]
    %v2063 = vld [vmem:[#allocation10 + $0x128] sm:$0xf]
    %v2064 = vld [vmem:[#allocation10 + $0x12c] sm:$0xf]
    %v2065 = vld [vmem:[#allocation10 + $0x130] sm:$0xf]
    %v2066 = vld [vmem:[#allocation10 + $0x134] sm:$0xf]
    %v2067 = vld [vmem:[#allocation10 + $0x138] sm:$0xf]
    %v2068 = vld [vmem:[#allocation10 + $0x13c] sm:$0xf]
    %v2069 = vld [vmem:[#allocation10 + $0x140] sm:$0xf]
    %v2070 = vld [vmem:[#allocation10 + $0x144] sm:$0xf]
    %v2071 = vld [vmem:[#allocation10 + $0x148] sm:$0xf]
    %v2072 = vld [vmem:[#allocation10 + $0x14c] sm:$0xf]
    %v2073 = vld [vmem:[#allocation10 + $0x150] sm:$0xf]
    %v2074 = vld [vmem:[#allocation10 + $0x154] sm:$0xf]
    %v2075 = vld [vmem:[#allocation10 + $0x158] sm:$0xf]
    %v2076 = vld [vmem:[#allocation10 + $0x15c] sm:$0xf]
    %v2077 = vld [vmem:[#allocation10 + $0x160] sm:$0xf]
    %v2078 = vld [vmem:[#allocation10 + $0x164] sm:$0xf]
    %v2079 = vld [vmem:[#allocation10 + $0x168] sm:$0xf]
    %v2080 = vld [vmem:[#allocation10 + $0x16c] sm:$0xf]
    %v2081 = vld [vmem:[#allocation10 + $0x170] sm:$0xf]
    %v2082 = vld [vmem:[#allocation10 + $0x174] sm:$0xf]
    %v2083 = vld [vmem:[#allocation10 + $0x178] sm:$0xf]
    %v2084 = vld [vmem:[#allocation10 + $0x17c] sm:$0xf]
    %v2085 = vld [vmem:[%s6] sm:$0x1]
    %v2087 = vlaneseq
    %v2088 = vshrl.u32 %v2087, 7
    %v2089 = vsub.s32 0, %v2088
    %v2090 = vrot.slane %v2085, %v2089
    %v2188 = vunpack.c.l.b16 %v1989
    %v2189 = vunpack.c.l.b16 %v1990
    %v2190 = vunpack.c.l.b16 %v1991
    %v2191 = vunpack.c.l.b16 %v1992
    %v2192 = vunpack.c.l.b16 %v1993
    %v2193 = vunpack.c.l.b16 %v1994
    %v2194 = vunpack.c.l.b16 %v1995
    %v2195 = vunpack.c.l.b16 %v1996
    %v2196 = vunpack.c.l.b16 %v1997
    %v2197 = vunpack.c.l.b16 %v1998
    %v2198 = vunpack.c.l.b16 %v1999
    %v2199 = vunpack.c.l.b16 %v2000
    %v2200 = vunpack.c.l.b16 %v2001
    %v2201 = vunpack.c.l.b16 %v2002
    %v2202 = vunpack.c.l.b16 %v2003
    %v2203 = vunpack.c.l.b16 %v2004
    %v2204 = vunpack.c.l.b16 %v2005
    %v2205 = vunpack.c.l.b16 %v2006
    %v2206 = vunpack.c.l.b16 %v2007
    %v2207 = vunpack.c.l.b16 %v2008
    %v2208 = vunpack.c.l.b16 %v2009
    %v2209 = vunpack.c.l.b16 %v2010
    %v2210 = vunpack.c.l.b16 %v2011
    %v2211 = vunpack.c.l.b16 %v2012
    %v2212 = vunpack.c.l.b16 %v2013
    %v2213 = vunpack.c.l.b16 %v2014
    %v2214 = vunpack.c.l.b16 %v2015
    %v2215 = vunpack.c.l.b16 %v2016
    %v2216 = vunpack.c.l.b16 %v2017
    %v2217 = vunpack.c.l.b16 %v2018
    %v2218 = vunpack.c.l.b16 %v2019
    %v2219 = vunpack.c.l.b16 %v2020
    %v2220 = vunpack.c.l.b16 %v2021
    %v2221 = vunpack.c.l.b16 %v2022
    %v2222 = vunpack.c.l.b16 %v2023
    %v2223 = vunpack.c.l.b16 %v2024
    %v2224 = vunpack.c.l.b16 %v2025
    %v2225 = vunpack.c.l.b16 %v2026
    %v2226 = vunpack.c.l.b16 %v2027
    %v2227 = vunpack.c.l.b16 %v2028
    %v2228 = vunpack.c.l.b16 %v2029
    %v2229 = vunpack.c.l.b16 %v2030
    %v2230 = vunpack.c.l.b16 %v2031
    %v2231 = vunpack.c.l.b16 %v2032
    %v2232 = vunpack.c.l.b16 %v2033
    %v2233 = vunpack.c.l.b16 %v2034
    %v2234 = vunpack.c.l.b16 %v2035
    %v2235 = vunpack.c.l.b16 %v2036
    %v2236 = vunpack.c.l.b16 %v2037
    %v2237 = vunpack.c.l.b16 %v2038
    %v2238 = vunpack.c.l.b16 %v2039
    %v2239 = vunpack.c.l.b16 %v2040
    %v2240 = vunpack.c.l.b16 %v2041
    %v2241 = vunpack.c.l.b16 %v2042
    %v2242 = vunpack.c.l.b16 %v2043
    %v2243 = vunpack.c.l.b16 %v2044
    %v2244 = vunpack.c.l.b16 %v2045
    %v2245 = vunpack.c.l.b16 %v2046
    %v2246 = vunpack.c.l.b16 %v2047
    %v2247 = vunpack.c.l.b16 %v2048
    %v2248 = vunpack.c.l.b16 %v2049
    %v2249 = vunpack.c.l.b16 %v2050
    %v2250 = vunpack.c.l.b16 %v2051
    %v2251 = vunpack.c.l.b16 %v2052
    %v2252 = vunpack.c.l.b16 %v2053
    %v2253 = vunpack.c.l.b16 %v2054
    %v2254 = vunpack.c.l.b16 %v2055
    %v2255 = vunpack.c.l.b16 %v2056
    %v2256 = vunpack.c.l.b16 %v2057
    %v2257 = vunpack.c.l.b16 %v2058
    %v2258 = vunpack.c.l.b16 %v2059
    %v2259 = vunpack.c.l.b16 %v2060
    %v2260 = vunpack.c.l.b16 %v2061
    %v2261 = vunpack.c.l.b16 %v2062
    %v2262 = vunpack.c.l.b16 %v2063
    %v2263 = vunpack.c.l.b16 %v2064
    %v2264 = vunpack.c.l.b16 %v2065
    %v2265 = vunpack.c.l.b16 %v2066
    %v2266 = vunpack.c.l.b16 %v2067
    %v2267 = vunpack.c.l.b16 %v2068
    %v2268 = vunpack.c.l.b16 %v2069
    %v2269 = vunpack.c.l.b16 %v2070
    %v2270 = vunpack.c.l.b16 %v2071
    %v2271 = vunpack.c.l.b16 %v2072
    %v2272 = vunpack.c.l.b16 %v2073
    %v2273 = vunpack.c.l.b16 %v2074
    %v2274 = vunpack.c.l.b16 %v2075
    %v2275 = vunpack.c.l.b16 %v2076
    %v2276 = vunpack.c.l.b16 %v2077
    %v2277 = vunpack.c.l.b16 %v2078
    %v2278 = vunpack.c.l.b16 %v2079
    %v2279 = vunpack.c.l.b16 %v2080
    %v2280 = vunpack.c.l.b16 %v2081
    %v2281 = vunpack.c.l.b16 %v2082
    %v2282 = vunpack.c.l.b16 %v2083
    %v2283 = vunpack.c.l.b16 %v2084
    %v2284 = vpack.c.b16 %v2189, %v2188
    %v2285 = vpack.c.b16 %v2191, %v2190
    %v2286 = vpack.c.b16 %v2193, %v2192
    %v2287 = vpack.c.b16 %v2195, %v2194
    %v2288 = vpack.c.b16 %v2197, %v2196
    %v2289 = vpack.c.b16 %v2199, %v2198
    %v2290 = vpack.c.b16 %v2201, %v2200
    %v2291 = vpack.c.b16 %v2203, %v2202
    %v2292 = vpack.c.b16 %v2205, %v2204
    %v2293 = vpack.c.b16 %v2207, %v2206
    %v2294 = vpack.c.b16 %v2209, %v2208
    %v2295 = vpack.c.b16 %v2211, %v2210
    %v2296 = vpack.c.b16 %v2213, %v2212
    %v2297 = vpack.c.b16 %v2215, %v2214
    %v2298 = vpack.c.b16 %v2217, %v2216
    %v2299 = vpack.c.b16 %v2219, %v2218
    %v2300 = vpack.c.b16 %v2221, %v2220
    %v2301 = vpack.c.b16 %v2223, %v2222
    %v2302 = vpack.c.b16 %v2225, %v2224
    %v2303 = vpack.c.b16 %v2227, %v2226
    %v2304 = vpack.c.b16 %v2229, %v2228
    %v2305 = vpack.c.b16 %v2231, %v2230
    %v2306 = vpack.c.b16 %v2233, %v2232
    %v2307 = vpack.c.b16 %v2235, %v2234
    %v2308 = vpack.c.b16 %v2237, %v2236
    %v2309 = vpack.c.b16 %v2239, %v2238
    %v2310 = vpack.c.b16 %v2241, %v2240
    %v2311 = vpack.c.b16 %v2243, %v2242
    %v2312 = vpack.c.b16 %v2245, %v2244
    %v2313 = vpack.c.b16 %v2247, %v2246
    %v2314 = vpack.c.b16 %v2249, %v2248
    %v2315 = vpack.c.b16 %v2251, %v2250
    %v2316 = vpack.c.b16 %v2253, %v2252
    %v2317 = vpack.c.b16 %v2255, %v2254
    %v2318 = vpack.c.b16 %v2257, %v2256
    %v2319 = vpack.c.b16 %v2259, %v2258
    %v2320 = vpack.c.b16 %v2261, %v2260
    %v2321 = vpack.c.b16 %v2263, %v2262
    %v2322 = vpack.c.b16 %v2265, %v2264
    %v2323 = vpack.c.b16 %v2267, %v2266
    %v2324 = vpack.c.b16 %v2269, %v2268
    %v2325 = vpack.c.b16 %v2271, %v2270
    %v2326 = vpack.c.b16 %v2273, %v2272
    %v2327 = vpack.c.b16 %v2275, %v2274
    %v2328 = vpack.c.b16 %v2277, %v2276
    %v2329 = vpack.c.b16 %v2279, %v2278
    %v2330 = vpack.c.b16 %v2281, %v2280
    %v2331 = vpack.c.b16 %v2283, %v2282
    %2380 = vmatprep.subr.bf16.mxu0 0
    %2381 = vmatpush1.bf16.msra.mxu0 %v2291
    %2382 = vmatprep.subr.bf16.mxu0 0
    %2383 = vmatpush1.bf16.msra.mxu0 %v2290
    %2384 = vmatprep.subr.bf16.mxu0 0
    %2385 = vmatpush1.bf16.msra.mxu0 %v2289
    %2386 = vmatprep.subr.bf16.mxu0 0
    %2387 = vmatpush1.bf16.msra.mxu0 %v2288
    %2388 = vmatprep.subr.bf16.mxu0 0
    %2389 = vmatpush1.bf16.msra.mxu0 %v2287
    %2390 = vmatprep.subr.bf16.mxu0 0
    %2391 = vmatpush1.bf16.msra.mxu0 %v2286
    %2392 = vmatprep.subr.bf16.mxu0 0
    %2393 = vmatpush1.bf16.msra.mxu0 %v2285
    %2394 = vmatprep.subr.bf16.mxu0 0
    %2395 = vmatpush1.bf16.msra.mxu0 %v2284
    %2396 = vmatprep.subr.bf16.mxu0 0
    %2397 = vmatpush2.bf16.msra.mxu0 %v2299
    %2398 = vmatprep.subr.bf16.mxu0 0
    %2399 = vmatpush2.bf16.msra.mxu0 %v2298
    %2400 = vmatprep.subr.bf16.mxu0 0
    %2401 = vmatpush2.bf16.msra.mxu0 %v2297
    %2402 = vmatprep.subr.bf16.mxu0 0
    %2403 = vmatpush2.bf16.msra.mxu0 %v2296
    %2404 = vmatprep.subr.bf16.mxu0 0
    %2405 = vmatpush2.bf16.msra.mxu0 %v2295
    %2406 = vmatprep.subr.bf16.mxu0 0
    %2407 = vmatpush2.bf16.msra.mxu0 %v2294
    %2408 = vmatprep.subr.bf16.mxu0 0
    %2409 = vmatpush2.bf16.msra.mxu0 %v2293
    %2410 = vmatprep.subr.bf16.mxu0 0
    %2411 = vmatpush2.bf16.msra.mxu0 %v2292
    %2412 = vmatprep.mubr.bf16.mxu0 %v1984
    %2413 = vmatmul.mubr.bf16.gmra.mxu0 %v1983
    %v2414 = vpop.f32.mrf.mxu0
    %v2415 = vadd.f32 %v2090, %v2414
    %v2416 = vpop.f32.mrf.mxu0
    %v2417 = vpop.f32.mrf.mxu0
    %v2418 = vpop.f32.mrf.mxu0
    %2419 = vdwg.mxu0
    %2420 = vmatprep.subr.bf16.mxu0 0
    %2421 = vmatpush1.bf16.msra.mxu0 %v2307
    %2422 = vmatprep.subr.bf16.mxu0 0
    %2423 = vmatpush1.bf16.msra.mxu0 %v2306
    %2424 = vmatprep.subr.bf16.mxu0 0
    %2425 = vmatpush1.bf16.msra.mxu0 %v2305
    %2426 = vmatprep.subr.bf16.mxu0 0
    %2427 = vmatpush1.bf16.msra.mxu0 %v2304
    %2428 = vmatprep.subr.bf16.mxu0 0
    %2429 = vmatpush1.bf16.msra.mxu0 %v2303
    %2430 = vmatprep.subr.bf16.mxu0 0
    %2431 = vmatpush1.bf16.msra.mxu0 %v2302
    %2432 = vmatprep.subr.bf16.mxu0 0
    %2433 = vmatpush1.bf16.msra.mxu0 %v2301
    %2434 = vmatprep.subr.bf16.mxu0 0
    %2435 = vmatpush1.bf16.msra.mxu0 %v2300
    %2436 = vmatprep.subr.bf16.mxu0 0
    %2437 = vmatpush2.bf16.msra.mxu0 %v2315
    %2438 = vmatprep.subr.bf16.mxu0 0
    %2439 = vmatpush2.bf16.msra.mxu0 %v2314
    %2440 = vmatprep.subr.bf16.mxu0 0
    %2441 = vmatpush2.bf16.msra.mxu0 %v2313
    %2442 = vmatprep.subr.bf16.mxu0 0
    %2443 = vmatpush2.bf16.msra.mxu0 %v2312
    %2444 = vmatprep.subr.bf16.mxu0 0
    %2445 = vmatpush2.bf16.msra.mxu0 %v2311
    %2446 = vmatprep.subr.bf16.mxu0 0
    %2447 = vmatpush2.bf16.msra.mxu0 %v2310
    %2448 = vmatprep.subr.bf16.mxu0 0
    %2449 = vmatpush2.bf16.msra.mxu0 %v2309
    %2450 = vmatprep.subr.bf16.mxu0 0
    %2451 = vmatpush2.bf16.msra.mxu0 %v2308
    %2452 = vmatprep.mubr.bf16.mxu0 %v1986
    %2453 = vmatmul.mubr.bf16.gmra.mxu0 %v1985
    %v2454 = vpop.f32.mrf.mxu0
    %v2455 = vadd.f32 %v2415, %v2454
    %v2456 = vpop.f32.mrf.mxu0
    %v2457 = vpop.f32.mrf.mxu0
    %v2458 = vpop.f32.mrf.mxu0
    %2459 = vdwg.mxu0
    %2460 = vmatprep.subr.bf16.mxu0 0
    %2461 = vmatpush1.bf16.msra.mxu0 %v2323
    %2462 = vmatprep.subr.bf16.mxu0 0
    %2463 = vmatpush1.bf16.msra.mxu0 %v2322
    %2464 = vmatprep.subr.bf16.mxu0 0
    %2465 = vmatpush1.bf16.msra.mxu0 %v2321
    %2466 = vmatprep.subr.bf16.mxu0 0
    %2467 = vmatpush1.bf16.msra.mxu0 %v2320
    %2468 = vmatprep.subr.bf16.mxu0 0
    %2469 = vmatpush1.bf16.msra.mxu0 %v2319
    %2470 = vmatprep.subr.bf16.mxu0 0
    %2471 = vmatpush1.bf16.msra.mxu0 %v2318
    %2472 = vmatprep.subr.bf16.mxu0 0
    %2473 = vmatpush1.bf16.msra.mxu0 %v2317
    %2474 = vmatprep.subr.bf16.mxu0 0
    %2475 = vmatpush1.bf16.msra.mxu0 %v2316
    %2476 = vmatprep.subr.bf16.mxu0 0
    %2477 = vmatpush2.bf16.msra.mxu0 %v2331
    %2478 = vmatprep.subr.bf16.mxu0 0
    %2479 = vmatpush2.bf16.msra.mxu0 %v2330
    %2480 = vmatprep.subr.bf16.mxu0 0
    %2481 = vmatpush2.bf16.msra.mxu0 %v2329
    %2482 = vmatprep.subr.bf16.mxu0 0
    %2483 = vmatpush2.bf16.msra.mxu0 %v2328
    %2484 = vmatprep.subr.bf16.mxu0 0
    %2485 = vmatpush2.bf16.msra.mxu0 %v2327
    %2486 = vmatprep.subr.bf16.mxu0 0
    %2487 = vmatpush2.bf16.msra.mxu0 %v2326
    %2488 = vmatprep.subr.bf16.mxu0 0
    %2489 = vmatpush2.bf16.msra.mxu0 %v2325
    %2490 = vmatprep.subr.bf16.mxu0 0
    %2491 = vmatpush2.bf16.msra.mxu0 %v2324
    %2492 = vmatprep.mubr.bf16.mxu0 %v1988
    %2493 = vmatmul.mubr.bf16.gmra.mxu0 %v1987
    %v2494 = vpop.f32.mrf.mxu0
    %v2495 = vadd.f32 %v2455, %v2494
    %v2496 = vpop.f32.mrf.mxu0
    %v2497 = vpop.f32.mrf.mxu0
    %v2498 = vpop.f32.mrf.mxu0
    %2499 = vdwg.mxu0
    %2500 = vst [vmem:[#allocation11] sm:$0x3] %v2495
    // Predicated region
    $region50: #{tpu_custom_call.1} parent=1 // pred_check
      _
    $region51: #{tpu_custom_call.1} parent=1 // pred_check_branch
      %2502 = sbr.rel (0) target = $region53
    $region52: #{tpu_custom_call.1} parent=1 // pred_region
      %s2504 = ssub.s32 32, 32
      %2505 = vsyncadd [#allocation4], %s2504
      %s2507 = sshll.u32 [#allocation11], 4
      %s2508 = int_to_ptr.vmem [resolvable:$true] %s2507
      %2510 = dma.vmem_to_hbm [thread:$0]  %s2508, 32, %s7, [#allocation4]
    $region53: #{tpu_custom_call.1} parent=1 // pred_fallthru
      _
    // Predicated region
    $region54: #{tpu_custom_call.1} parent=1 // pred_check
      _
    $region55: #{tpu_custom_call.1} parent=1 // pred_check_branch
      %2512 = sbr.rel (0) target = $region57
    $region56: #{tpu_custom_call.1} parent=1 // pred_region
      %2513 = dma.done [#allocation4], 32
    $region57: #{tpu_custom_call.1} parent=1 // pred_fallthru
      _
    %2514 = vsyncpa [#allocation3], 1
    %2515 = vsyncpa [#allocation6], 1
    %2516 = vsyncpa [#allocation9], 1
    %2517 = vsyncpa [#allocation4], 1

</llo_original>
